<compile_context>
chip_gen: v7x
topology: tpu7x:2x2x1
jax: 0.10.0
libtpu: 0.0.40
codegen_flags: <defaults>
</compile_context>

<pallas_src>
import functools

import jax
import jax.numpy as jnp
from jax import lax
from jax.experimental import pallas as pl
from jax.experimental.pallas import tpu as pltpu

_NEG = -1e30


def _clip_loss_kernel(scale_ref, img_ref, txt_ref, lse_ref, col_lse_ref,
                      m_sc, l_sc, *, block, n_valid):
    k = pl.program_id(1)            # column tile (reduction sweep, "arbitrary")
    nk = pl.num_programs(1)
    needs_mask = (n_valid % block) != 0            # static python bool (padding present)

    @pl.when(k == 0)
    def _init():
        m_sc[...] = jnp.full_like(m_sc, _NEG)
        l_sc[...] = jnp.zeros_like(l_sc)

    # MXU sees the (bf16) operands, accumulates f32; contract dim 1 vs dim 1 so the
    # text tile is consumed as [block, D] with no explicit transpose.
    s = lax.dot_general(img_ref[...], txt_ref[...], (((1,), (1,)), ((), ())),
                        preferred_element_type=jnp.float32)     # (block, block) f32
    # Scale applied post-matmul in f32 (review 2a): no per-step (block, D) multiply,
    # no bf16 quantisation of logit_scale.
    s = s * scale_ref[0, 0]

    if needs_mask:
        i = pl.program_id(0)
        col_ids = k * block + lax.broadcasted_iota(jnp.int32, (1, block), 1)
        row_ids = i * block + lax.broadcasted_iota(jnp.int32, (block, 1), 0)
        s = jnp.where(col_ids < n_valid, s, _NEG)
        s = jnp.where(row_ids < n_valid, s, _NEG)

    # --- image -> text: online row logsumexp across the k sweep (f32 math). ---
    m_prev = m_sc[...]
    m_new = jnp.maximum(m_prev, jnp.max(s, axis=1, keepdims=True))
    p = jnp.exp(s - m_new)
    l_sc[...] = jnp.exp(m_prev - m_new) * l_sc[...] + jnp.sum(p, axis=1, keepdims=True)
    m_sc[...] = m_new

    # --- text -> image: per-(i, k) column-LSE partials, shifted by the per-column
    # tile max (always in [exp(-inf), 1], so no under/overflow regardless of
    # logit_scale).  Lane-dense (1, block) store; merged with logsumexp outside.
    cmax = jnp.max(s, axis=0, keepdims=True)                    # (1, block)
    csum = jnp.sum(jnp.exp(s - cmax), axis=0, keepdims=True)    # >= 1 always
    col_lse_ref[0, 0, :, :] = cmax + jnp.log(csum)

    @pl.when(k == nk - 1)
    def _finalize():
        # Written once per row tile; (block, 1) layout kept for lowering safety
        # (sub-1% VMEM cost now that the diag stream is gone).
        lse_ref[...] = m_sc[...] + jnp.log(l_sc[...])


def _vmem_limit_bytes():
    try:
        cap = int(pltpu.get_tpu_info().vmem_capacity_bytes)
    except Exception:
        cap = 64 * 1024 * 1024      # conservative fallback (v7x per-core physical VMEM)
    return max(32 * 1024 * 1024, min(3 * cap // 4, 100 * 1024 * 1024))


def _pick_block(n, d, operand_bytes, vmem_limit):
    """Largest tile that fits the VMEM budget, derived from D/dtype/chip VMEM."""
    def need(b):
        inputs = 4 * b * d * operand_bytes        # img + txt tiles, double-buffered
        lse_out = 2 * (b // 8) * 4096             # (b, 1) f32 pads to 128 lanes
        scratch = 2 * (b // 8) * 4096             # m_sc, l_sc
        col_out = 2 * 8 * b * 4                   # lane-dense (1, b) partials
        temps = 6 * b * b * 4                     # s, p, exp(s - cmax) + headroom
        return inputs + lse_out + scratch + col_out + temps

    budget = vmem_limit - (6 << 20)               # slack for internal scratch / spills
    cap = max(128, -(-n // 128) * 128)            # no point exceeding padded N
    feasible = [b for b in (1024, 768, 512, 384, 256, 128)
                if b <= cap and need(b) <= budget]
    if not feasible:
        return 128
    best = feasible[0]
    gm = -(-n // best)
    # Prefer an even row-tile count (the "parallel" axis) so both TensorCores of a
    # 2-TC part stay balanced, but only if it doesn't shrink the tile too much.
    if gm > 1 and gm % 2 == 1:
        for b in feasible:
            if (-(-n // b)) % 2 == 0 and 4 * b >= 3 * best:
                return b
    return best


def clip_loss(image_features, text_features, logit_scale, *, block=None,
              mxu_dtype=jnp.bfloat16):
    """Symmetric CLIP cross-entropy loss. image/text_features: [N, D]; logit_scale scalar."""
    n, d = image_features.shape
    assert text_features.shape == (n, d)

    scale_f32 = jnp.asarray(logit_scale, jnp.float32)

    # Diagonal logits (labels = arange) straight from the unpadded f32 features:
    # O(N*D), fused by XLA, keeps the kernel to two input streams (review item 1).
    diag = scale_f32 * jnp.sum(image_features.astype(jnp.float32) *
                               text_features.astype(jnp.float32), axis=-1)

    # MXU operand dtype (review item 7): bf16 unless caller opts out or input is
    # already sub-f32.  Softmax/LSE math stays f32 inside the kernel.
    op_dtype = image_features.dtype
    if mxu_dtype is not None and op_dtype == jnp.float32:
        op_dtype = mxu_dtype
    img = image_features.astype(op_dtype)
    txt = text_features.astype(op_dtype)

    vmem_limit = _vmem_limit_bytes()
    if block is None:
        block = _pick_block(n, d, jnp.dtype(op_dtype).itemsize, vmem_limit)

    n_pad = -(-n // block) * block
    if n_pad != n:
        img = jnp.pad(img, ((0, n_pad - n), (0, 0)))
        txt = jnp.pad(txt, ((0, n_pad - n), (0, 0)))
    gm = n_pad // block
    gk = n_pad // block

    scale_smem = scale_f32.reshape(1, 1)
    kernel = functools.partial(_clip_loss_kernel, block=block, n_valid=n)

    grid_spec = pltpu.PrefetchScalarGridSpec(
        num_scalar_prefetch=0,
        grid=(gm, gk),
        in_specs=[
            pl.BlockSpec(memory_space=pltpu.SMEM),               # logit_scale (1,1)
            pl.BlockSpec((block, d), lambda i, k: (i, 0)),       # image rows (resident over k)
            pl.BlockSpec((block, d), lambda i, k: (k, 0)),       # text columns (streamed)
        ],
        out_specs=[
            pl.BlockSpec((block, 1), lambda i, k: (i, 0)),            # row logsumexp
            pl.BlockSpec((1, 1, 1, block), lambda i, k: (i, k, 0, 0)),  # column-LSE partials
        ],
        scratch_shapes=[
            pltpu.VMEM((block, 1), jnp.float32),   # running row max
            pltpu.VMEM((block, 1), jnp.float32),   # running row sum-exp
        ],
    )

    eb = jnp.dtype(op_dtype).itemsize
    cost = pl.CostEstimate(
        flops=2 * n_pad * n_pad * d + 10 * n_pad * n_pad,
        transcendentals=2 * n_pad * n_pad,
        bytes_accessed=(gm + 1) * n_pad * d * eb + (gm + 2) * n_pad * 4,
    )

    lse_row, col_lse = pl.pallas_call(
        kernel,
        grid_spec=grid_spec,
        out_shape=[
            jax.ShapeDtypeStruct((n_pad, 1), jnp.float32),
            jax.ShapeDtypeStruct((gm, gk, 1, block), jnp.float32),
        ],
        compiler_params=pltpu.CompilerParams(
            dimension_semantics=("parallel", "arbitrary"),
            vmem_limit_bytes=vmem_limit,
        ),
        cost_estimate=cost,
    )(scale_smem, img, txt)

    # O(gm * N) epilogue in plain JAX (glue, not the hot path).
    lse_i = lse_row[:n, 0]                                   # image -> text row LSE
    col_part = col_lse.reshape(gm, n_pad)[:, :n]
    lse_t = jax.scipy.special.logsumexp(col_part, axis=0)    # text -> image row LSE
    loss_img = jnp.mean(lse_i - diag)                        # CE(logits_per_image, arange)
    loss_txt = jnp.mean(lse_t - diag)                        # CE(logits_per_text,  arange)
    return 0.5 * (loss_img + loss_txt)


def clip_loss_ref(image_features, text_features, logit_scale):
    """Pure-JAX reference mirroring the PyTorch module (f32 matmul, HIGHEST precision)."""
    logits_per_image = logit_scale * jnp.dot(image_features, text_features.T,
                                             precision=lax.Precision.HIGHEST)
    logits_per_text = logits_per_image.T
    n = logits_per_image.shape[0]
    labels = jnp.arange(n)

    def ce(logits):
        lse = jax.scipy.special.logsumexp(logits, axis=1)
        return jnp.mean(lse - logits[labels, labels])

    return 0.5 * (ce(logits_per_image) + ce(logits_per_text))


if __name__ == "__main__":
    # --- Test A: default path (bf16 MXU operands), N not a tile multiple. ---
    key = jax.random.PRNGKey(0)
    k1, k2 = jax.random.split(key)
    N, D = 200, 64
    img = jax.random.normal(k1, (N, D), dtype=jnp.float32)
    txt = jax.random.normal(k2, (N, D), dtype=jnp.float32)
    img = img / jnp.linalg.norm(img, axis=-1, keepdims=True)
    txt = txt / jnp.linalg.norm(txt, axis=-1, keepdims=True)
    scale = jnp.exp(jnp.asarray(0.07, jnp.float32))
    out = jax.block_until_ready(clip_loss(img, txt, scale))
    ref = jax.block_until_ready(clip_loss_ref(img, txt, scale))
    assert jnp.isfinite(out), out
    assert jnp.allclose(out, ref, atol=1e-2, rtol=1e-2), (out, ref)

    # --- Test B: f32 operands, forced 128-tile -> 3x3 grid with masking, large
    # trained-style logit_scale (stresses the per-tile column-LSE merge that replaced
    # the underflow-prone fixed-shift column sums). ---
    k3, k4 = jax.random.split(jax.random.PRNGKey(1))
    N2, D2 = 320, 64
    img2 = jax.random.normal(k3, (N2, D2), dtype=jnp.float32)
    txt2 = jax.random.normal(k4, (N2, D2), dtype=jnp.float32)
    img2 = img2 / jnp.linalg.norm(img2, axis=-1, keepdims=True)
    txt2 = txt2 / jnp.linalg.norm(txt2, axis=-1, keepdims=True)
    scale2 = jnp.asarray(100.0, jnp.float32)
    out2 = jax.block_until_ready(clip_loss(img2, txt2, scale2, block=128, mxu_dtype=None))
    ref2 = jax.block_until_ready(clip_loss_ref(img2, txt2, scale2))
    assert jnp.isfinite(out2), out2
    assert jnp.allclose(out2, ref2, atol=5e-2, rtol=1e-2), (out2, ref2)

    print("KERNEL_OK")
</pallas_src>

<mosaic_0001>
module attributes {stable_mosaic.version = 11 : i64} {
  func.func @_clip_loss_kernel(%arg0: i32, %arg1: i32, %arg2: memref<1x1xf32, #tpu.memory_space<smem>>, %arg3: memref<256x64xbf16, #tpu.memory_space<vmem>>, %arg4: memref<256x64xbf16, #tpu.memory_space<vmem>>, %arg5: memref<256x1xf32, #tpu.memory_space<vmem>>, %arg6: memref<1x1x1x256xf32, #tpu.memory_space<vmem>>, %arg7: memref<256x1xf32, #tpu.memory_space<vmem>>, %arg8: memref<256x1xf32, #tpu.memory_space<vmem>>) attributes {dimension_semantics = [#tpu.dimension_semantics<parallel>, #tpu.dimension_semantics<arbitrary>], iteration_bounds = array<i64: 1, 1>, scalar_prefetch = 0 : i64, scratch_operands = 2 : i64, tpu.core_type = #tpu.core_type<tc>, window_params = [{transform_indices = @transform_0, window_bounds = array<i64: 1, 1>}, {transform_indices = @transform_1, window_bounds = array<i64: 256, 64>}, {transform_indices = @transform_2, window_bounds = array<i64: 256, 64>}, {transform_indices = @transform_3, window_bounds = array<i64: 256, 1>}, {transform_indices = @transform_4, window_bounds = array<i64: 1, 1, 1, 256>}]} {
    %c0_i32 = arith.constant 0 : i32
    %0 = arith.cmpi eq, %arg1, %c0_i32 : i32
    %1 = arith.extui %0 : i1 to i32
    %c0_i32_0 = arith.constant 0 : i32
    %2 = arith.cmpi ne, %1, %c0_i32_0 : i32
    scf.if %2 {
      %cst_28 = arith.constant -1.000000e+30 : f32
      %60 = vector.broadcast %cst_28 : f32 to vector<256x1xf32>
      %c0_29 = arith.constant 0 : index
      %c0_30 = arith.constant 0 : index
      %61 = vector.load %arg7[%c0_29, %c0_30] : memref<256x1xf32, #tpu.memory_space<vmem>>, vector<256x1xf32>
      tpu.vector_store %arg7[%c0_29, %c0_30], %60 {strides = array<i32>} : memref<256x1xf32, #tpu.memory_space<vmem>>, vector<256x1xf32>,
      %cst_31 = arith.constant 0.000000e+00 : f32
      %62 = vector.broadcast %cst_31 : f32 to vector<256x1xf32>
      %c0_32 = arith.constant 0 : index
      %c0_33 = arith.constant 0 : index
      %63 = vector.load %arg8[%c0_32, %c0_33] : memref<256x1xf32, #tpu.memory_space<vmem>>, vector<256x1xf32>
      tpu.vector_store %arg8[%c0_32, %c0_33], %62 {strides = array<i32>} : memref<256x1xf32, #tpu.memory_space<vmem>>, vector<256x1xf32>,
    } else {
    }
    %c0 = arith.constant 0 : index
    %c0_1 = arith.constant 0 : index
    %3 = vector.load %arg3[%c0, %c0_1] : memref<256x64xbf16, #tpu.memory_space<vmem>>, vector<256x64xbf16>
    %c0_2 = arith.constant 0 : index
    %c0_3 = arith.constant 0 : index
    %4 = vector.load %arg4[%c0_2, %c0_3] : memref<256x64xbf16, #tpu.memory_space<vmem>>, vector<256x64xbf16>
    %cst = arith.constant dense<0.000000e+00> : vector<256x256xf32>
    %5 = tpu.matmul %3, %4, %cst {dimension_numbers = #tpu.dot_dimension_numbers<[1], [1], [0], [0], [0, 0, 1, 0], [], []>} : vector<256x64xbf16>, vector<256x64xbf16>, vector<256x256xf32> -> vector<256x256xf32>
    %c0_4 = arith.constant 0 : index
    %c0_5 = arith.constant 0 : index
    %6 = memref.load %arg2[%c0_4, %c0_5] : memref<1x1xf32, #tpu.memory_space<smem>>
    %7 = vector.broadcast %6 : f32 to vector<256x256xf32>
    %8 = arith.mulf %5, %7 : vector<256x256xf32>
    %c256_i32 = arith.constant 256 : i32
    %9 = arith.muli %arg1, %c256_i32 : i32
    %10 = tpu.iota {dimensions = array<i32: 1>} : vector<1x256xi32>
    %11 = vector.broadcast %9 : i32 to vector<1x256xi32>
    %12 = arith.addi %11, %10 : vector<1x256xi32>
    %c256_i32_6 = arith.constant 256 : i32
    %13 = arith.muli %arg0, %c256_i32_6 : i32
    %14 = tpu.iota {dimensions = array<i32: 0>} : vector<256x1xi32>
    %15 = vector.broadcast %13 : i32 to vector<256x1xi32>
    %16 = arith.addi %15, %14 : vector<256x1xi32>
    %c200_i32 = arith.constant 200 : i32
    %17 = vector.broadcast %c200_i32 : i32 to vector<1x256xi32>
    %18 = arith.cmpi slt, %12, %17 : vector<1x256xi32>
    %cst_7 = arith.constant -1.000000e+30 : f32
    %19 = vector.shape_cast %18 : vector<1x256xi1> to vector<1x256xi1>
    %20 = vector.broadcast %19 : vector<1x256xi1> to vector<256x256xi1>
    %21 = vector.broadcast %cst_7 : f32 to vector<256x256xf32>
    %22 = arith.select %20, %8, %21 : vector<256x256xi1>, vector<256x256xf32>
    %c200_i32_8 = arith.constant 200 : i32
    %23 = vector.broadcast %c200_i32_8 : i32 to vector<256x1xi32>
    %24 = arith.cmpi slt, %16, %23 : vector<256x1xi32>
    %cst_9 = arith.constant -1.000000e+30 : f32
    %25 = vector.shape_cast %24 : vector<256x1xi1> to vector<256x1xi1>
    %26 = vector.broadcast %25 : vector<256x1xi1> to vector<256x256xi1>
    %27 = vector.broadcast %cst_9 : f32 to vector<256x256xf32>
    %28 = arith.select %26, %22, %27 : vector<256x256xi1>, vector<256x256xf32>
    %c0_10 = arith.constant 0 : index
    %c0_11 = arith.constant 0 : index
    %29 = vector.load %arg7[%c0_10, %c0_11] : memref<256x1xf32, #tpu.memory_space<vmem>>, vector<256x1xf32>
    %cst_12 = arith.constant dense<0xFF800000> : vector<256xf32>
    %30 = vector.multi_reduction <maximumf>, %28, %cst_12 [1] : vector<256x256xf32> to vector<256xf32>
    %31 = vector.shape_cast %30 : vector<256xf32> to vector<256x1xf32>
    %32 = arith.maximumf %29, %31 : vector<256x1xf32>
    %33 = vector.broadcast %32 : vector<256x1xf32> to vector<256x256xf32>
    %34 = arith.subf %28, %33 : vector<256x256xf32>
    %35 = math.exp %34 : vector<256x256xf32>
    %36 = arith.subf %29, %32 : vector<256x1xf32>
    %37 = math.exp %36 : vector<256x1xf32>
    %c0_13 = arith.constant 0 : index
    %c0_14 = arith.constant 0 : index
    %38 = vector.load %arg8[%c0_13, %c0_14] : memref<256x1xf32, #tpu.memory_space<vmem>>, vector<256x1xf32>
    %39 = arith.mulf %37, %38 : vector<256x1xf32>
    %cst_15 = arith.constant dense<0.000000e+00> : vector<256xf32>
    %40 = vector.multi_reduction <add>, %35, %cst_15 [1] : vector<256x256xf32> to vector<256xf32>
    %41 = vector.shape_cast %40 : vector<256xf32> to vector<256x1xf32>
    %42 = arith.addf %39, %41 : vector<256x1xf32>
    %c0_16 = arith.constant 0 : index
    %c0_17 = arith.constant 0 : index
    %43 = vector.load %arg8[%c0_16, %c0_17] : memref<256x1xf32, #tpu.memory_space<vmem>>, vector<256x1xf32>
    tpu.vector_store %arg8[%c0_16, %c0_17], %42 {strides = array<i32>} : memref<256x1xf32, #tpu.memory_space<vmem>>, vector<256x1xf32>,
    %c0_18 = arith.constant 0 : index
    %c0_19 = arith.constant 0 : index
    %44 = vector.load %arg7[%c0_18, %c0_19] : memref<256x1xf32, #tpu.memory_space<vmem>>, vector<256x1xf32>
    tpu.vector_store %arg7[%c0_18, %c0_19], %32 {strides = array<i32>} : memref<256x1xf32, #tpu.memory_space<vmem>>, vector<256x1xf32>,
    %cst_20 = arith.constant dense<0xFF800000> : vector<256xf32>
    %45 = vector.multi_reduction <maximumf>, %28, %cst_20 [0] : vector<256x256xf32> to vector<256xf32>
    %46 = vector.shape_cast %45 : vector<256xf32> to vector<1x256xf32>
    %47 = vector.broadcast %46 : vector<1x256xf32> to vector<256x256xf32>
    %48 = arith.subf %28, %47 : vector<256x256xf32>
    %49 = math.exp %48 : vector<256x256xf32>
    %cst_21 = arith.constant dense<0.000000e+00> : vector<256xf32>
    %50 = vector.multi_reduction <add>, %49, %cst_21 [0] : vector<256x256xf32> to vector<256xf32>
    %51 = vector.shape_cast %50 : vector<256xf32> to vector<1x256xf32>
    %52 = math.log %51 : vector<1x256xf32>
    %53 = arith.addf %46, %52 : vector<1x256xf32>
    %c0_22 = arith.constant 0 : index
    %c0_23 = arith.constant 0 : index
    %c0_24 = arith.constant 0 : index
    %c0_25 = arith.constant 0 : index
    %54 = vector.load %arg6[%c0_22, %c0_23, %c0_24, %c0_25] : memref<1x1x1x256xf32, #tpu.memory_space<vmem>>, vector<1x1x1x256xf32>
    %55 = vector.shape_cast %54 : vector<1x1x1x256xf32> to vector<1x256xf32>
    %56 = vector.shape_cast %53 : vector<1x256xf32> to vector<1x1x1x256xf32>
    tpu.vector_store %arg6[%c0_22, %c0_23, %c0_24, %c0_25], %56 {strides = array<i32>} : memref<1x1x1x256xf32, #tpu.memory_space<vmem>>, vector<1x1x1x256xf32>,
    %c0_i32_26 = arith.constant 0 : i32
    %57 = arith.cmpi eq, %arg1, %c0_i32_26 : i32
    %58 = arith.extui %57 : i1 to i32
    %c0_i32_27 = arith.constant 0 : i32
    %59 = arith.cmpi ne, %58, %c0_i32_27 : i32
    scf.if %59 {
      %c0_28 = arith.constant 0 : index
      %c0_29 = arith.constant 0 : index
      %60 = vector.load %arg7[%c0_28, %c0_29] : memref<256x1xf32, #tpu.memory_space<vmem>>, vector<256x1xf32>
      %c0_30 = arith.constant 0 : index
      %c0_31 = arith.constant 0 : index
      %61 = vector.load %arg8[%c0_30, %c0_31] : memref<256x1xf32, #tpu.memory_space<vmem>>, vector<256x1xf32>
      %62 = math.log %61 : vector<256x1xf32>
      %63 = arith.addf %60, %62 : vector<256x1xf32>
      %c0_32 = arith.constant 0 : index
      %c0_33 = arith.constant 0 : index
      %64 = vector.load %arg5[%c0_32, %c0_33] : memref<256x1xf32, #tpu.memory_space<vmem>>, vector<256x1xf32>
      tpu.vector_store %arg5[%c0_32, %c0_33], %63 {strides = array<i32>} : memref<256x1xf32, #tpu.memory_space<vmem>>, vector<256x1xf32>,
    } else {
    }
    return
  }
  func.func @transform_0(%arg0: i32, %arg1: i32) -> (i32, i32) {
    %c0_i32 = arith.constant 0 : i32
    %c0_i32_0 = arith.constant 0 : i32
    %c0_i32_1 = arith.constant 0 : i32
    return %c0_i32, %c0_i32_0 : i32, i32
  }
  func.func @transform_1(%arg0: i32, %arg1: i32) -> (i32, i32) {
    %c0_i32 = arith.constant 0 : i32
    %c0_i32_0 = arith.constant 0 : i32
    return %arg0, %c0_i32 : i32, i32
  }
  func.func @transform_2(%arg0: i32, %arg1: i32) -> (i32, i32) {
    %c0_i32 = arith.constant 0 : i32
    %c0_i32_0 = arith.constant 0 : i32
    return %arg1, %c0_i32 : i32, i32
  }
  func.func @transform_3(%arg0: i32, %arg1: i32) -> (i32, i32) {
    %c0_i32 = arith.constant 0 : i32
    %c0_i32_0 = arith.constant 0 : i32
    return %arg0, %c0_i32 : i32, i32
  }
  func.func @transform_4(%arg0: i32, %arg1: i32) -> (i32, i32, i32, i32) {
    %c0_i32 = arith.constant 0 : i32
    %c0_i32_0 = arith.constant 0 : i32
    %c0_i32_1 = arith.constant 0 : i32
    return %arg0, %arg1, %c0_i32, %c0_i32_0 : i32, i32, i32, i32
  }
}

</mosaic_0001>

<llo_original>
// kernel: tpu_custom_call.1
$region0: #{tpu_custom_call.1}
  #allocation0 [shape = 'u32[]', space=smem, size = 0x4, offset = 0x4, fixed_abs, tag = 'smem constant byte address 0x4 - core index']
  #allocation1 [shape = 'u32[144,128]{1,0:T(1,128)}', space=vmem, size = 0x12000, scoped, tag = 'internal scratch']
  #allocation2 [shape = 'f32[256,1]{1,0:T(8,128)}', space=vmem, size = 0x20000, scoped, tag = 'scratch operand']
  #allocation3 [shape = 'f32[256,1]{1,0:T(8,128)}', space=vmem, size = 0x20000, scoped, tag = 'scratch operand']
  #allocation4 [shape = 'f32[1,1]{1,0:T(1,128)S(6)}', space=smem, size = 0x200, scoped, tag = 'scoped memory for tpu_custom_call.1']
  %s0 = inlined_call_operand.<no memory space> [shape: f32[1,1], index: 0, kind: input, shape index: {}]
  %s1 = inlined_call_operand.vmem [shape: bf16[256,64], index: 1, kind: input, shape index: {}]
  %s2 = inlined_call_operand.vmem [shape: bf16[256,64], index: 2, kind: input, shape index: {}]
  %s3 = inlined_call_operand.vmem [shape: f32[256,1], index: 3, kind: output, shape index: {0}]
  %s4 = inlined_call_operand.hbm [shape: f32[1,1,1,256], index: 4, kind: output, shape index: {1}]
  %5 = xla_tuple %s3, %s4
  %s6 = sld [smem:[#allocation0]]
  $region38: #{tpu_custom_call.1} parent=0
    _
  %s8 = ssub.s32 1, %s6
  %s9 = scalar_select 0, %s8, %s6
  %10 = sst [smem:[#allocation4]] %s0
  $region1: #{tpu_custom_call.1} parent=0
    #allocation5 [shape = 'u8[1024]{0}', space=vmem, size = 0x400, scoped, tag = 'output window, operand 1, single buffered']
    #allocation6 [shape = 's32[1]{0}', space=sflag, size = 0x4, scoped, tag = 'scoped memory for tpu_custom_call.1']
    %11 = vsyncpa [#allocation6], 0
    // Predicated region
    $region2: #{tpu_custom_call.1} parent=1 // pred_check
      _
    $region3: #{tpu_custom_call.1} parent=1 // pred_check_branch
      %13 = sbr.rel (0) target = $region5
    $region4: #{tpu_custom_call.1} parent=1 // pred_region
      _
    $region5: #{tpu_custom_call.1} parent=1 // pred_fallthru
      _
    // Predicated region
    $region6: #{tpu_custom_call.1} parent=1 // pred_check
      _
    $region7: #{tpu_custom_call.1} parent=1 // pred_check_branch
      %15 = sbr.rel (0) target = $region9
    $region8: #{tpu_custom_call.1} parent=1 // pred_region
      _
    $region9: #{tpu_custom_call.1} parent=1 // pred_fallthru
      _
    // Predicated region
    $region10: #{tpu_custom_call.1} parent=1 // pred_check
      _
    $region11: #{tpu_custom_call.1} parent=1 // pred_check_branch
      %17 = sbr.rel (0) target = $region13
    $region12: #{tpu_custom_call.1} parent=1 // pred_region
      _
    $region13: #{tpu_custom_call.1} parent=1 // pred_fallthru
      _
    %p19 = scmp.eq.s32.totalorder 0, 0
    // Predicated region
    $region14: #{tpu_custom_call.1} parent=1 // pred_check
      %p20 = pneg %p19
    $region15: #{tpu_custom_call.1} parent=1 // pred_check_branch
      %22 = sbr.rel (%p20) target = $region17
    $region16: #{tpu_custom_call.1} parent=1 // pred_region
      %vm23 = vcmask 7168
      %24 = vst.msk [vmem:[#allocation2] sm:$0xff] %vm23, -1e+30
      %25 = vst.msk [vmem:[#allocation2 + $0x8] sm:$0xff] %vm23, -1e+30
      %26 = vst.msk [vmem:[#allocation2 + $0x10] sm:$0xff] %vm23, -1e+30
      %27 = vst.msk [vmem:[#allocation2 + $0x18] sm:$0xff] %vm23, -1e+30
      %28 = vst.msk [vmem:[#allocation2 + $0x20] sm:$0xff] %vm23, -1e+30
      %29 = vst.msk [vmem:[#allocation2 + $0x28] sm:$0xff] %vm23, -1e+30
      %30 = vst.msk [vmem:[#allocation2 + $0x30] sm:$0xff] %vm23, -1e+30
      %31 = vst.msk [vmem:[#allocation2 + $0x38] sm:$0xff] %vm23, -1e+30
      %32 = vst.msk [vmem:[#allocation2 + $0x40] sm:$0xff] %vm23, -1e+30
      %33 = vst.msk [vmem:[#allocation2 + $0x48] sm:$0xff] %vm23, -1e+30
      %34 = vst.msk [vmem:[#allocation2 + $0x50] sm:$0xff] %vm23, -1e+30
      %35 = vst.msk [vmem:[#allocation2 + $0x58] sm:$0xff] %vm23, -1e+30
      %36 = vst.msk [vmem:[#allocation2 + $0x60] sm:$0xff] %vm23, -1e+30
      %37 = vst.msk [vmem:[#allocation2 + $0x68] sm:$0xff] %vm23, -1e+30
      %38 = vst.msk [vmem:[#allocation2 + $0x70] sm:$0xff] %vm23, -1e+30
      %39 = vst.msk [vmem:[#allocation2 + $0x78] sm:$0xff] %vm23, -1e+30
      %40 = vst.msk [vmem:[#allocation2 + $0x80] sm:$0xff] %vm23, -1e+30
      %41 = vst.msk [vmem:[#allocation2 + $0x88] sm:$0xff] %vm23, -1e+30
      %42 = vst.msk [vmem:[#allocation2 + $0x90] sm:$0xff] %vm23, -1e+30
      %43 = vst.msk [vmem:[#allocation2 + $0x98] sm:$0xff] %vm23, -1e+30
      %44 = vst.msk [vmem:[#allocation2 + $0xa0] sm:$0xff] %vm23, -1e+30
      %45 = vst.msk [vmem:[#allocation2 + $0xa8] sm:$0xff] %vm23, -1e+30
      %46 = vst.msk [vmem:[#allocation2 + $0xb0] sm:$0xff] %vm23, -1e+30
      %47 = vst.msk [vmem:[#allocation2 + $0xb8] sm:$0xff] %vm23, -1e+30
      %48 = vst.msk [vmem:[#allocation2 + $0xc0] sm:$0xff] %vm23, -1e+30
      %49 = vst.msk [vmem:[#allocation2 + $0xc8] sm:$0xff] %vm23, -1e+30
      %50 = vst.msk [vmem:[#allocation2 + $0xd0] sm:$0xff] %vm23, -1e+30
      %51 = vst.msk [vmem:[#allocation2 + $0xd8] sm:$0xff] %vm23, -1e+30
      %52 = vst.msk [vmem:[#allocation2 + $0xe0] sm:$0xff] %vm23, -1e+30
      %53 = vst.msk [vmem:[#allocation2 + $0xe8] sm:$0xff] %vm23, -1e+30
      %54 = vst.msk [vmem:[#allocation2 + $0xf0] sm:$0xff] %vm23, -1e+30
      %55 = vst.msk [vmem:[#allocation2 + $0xf8] sm:$0xff] %vm23, -1e+30
      %56 = vst.msk [vmem:[#allocation3] sm:$0xff] %vm23, 0.0
      %57 = vst.msk [vmem:[#allocation3 + $0x8] sm:$0xff] %vm23, 0.0
      %58 = vst.msk [vmem:[#allocation3 + $0x10] sm:$0xff] %vm23, 0.0
      %59 = vst.msk [vmem:[#allocation3 + $0x18] sm:$0xff] %vm23, 0.0
      %60 = vst.msk [vmem:[#allocation3 + $0x20] sm:$0xff] %vm23, 0.0
      %61 = vst.msk [vmem:[#allocation3 + $0x28] sm:$0xff] %vm23, 0.0
      %62 = vst.msk [vmem:[#allocation3 + $0x30] sm:$0xff] %vm23, 0.0
      %63 = vst.msk [vmem:[#allocation3 + $0x38] sm:$0xff] %vm23, 0.0
      %64 = vst.msk [vmem:[#allocation3 + $0x40] sm:$0xff] %vm23, 0.0
      %65 = vst.msk [vmem:[#allocation3 + $0x48] sm:$0xff] %vm23, 0.0
      %66 = vst.msk [vmem:[#allocation3 + $0x50] sm:$0xff] %vm23, 0.0
      %67 = vst.msk [vmem:[#allocation3 + $0x58] sm:$0xff] %vm23, 0.0
      %68 = vst.msk [vmem:[#allocation3 + $0x60] sm:$0xff] %vm23, 0.0
      %69 = vst.msk [vmem:[#allocation3 + $0x68] sm:$0xff] %vm23, 0.0
      %70 = vst.msk [vmem:[#allocation3 + $0x70] sm:$0xff] %vm23, 0.0
      %71 = vst.msk [vmem:[#allocation3 + $0x78] sm:$0xff] %vm23, 0.0
      %72 = vst.msk [vmem:[#allocation3 + $0x80] sm:$0xff] %vm23, 0.0
      %73 = vst.msk [vmem:[#allocation3 + $0x88] sm:$0xff] %vm23, 0.0
      %74 = vst.msk [vmem:[#allocation3 + $0x90] sm:$0xff] %vm23, 0.0
      %75 = vst.msk [vmem:[#allocation3 + $0x98] sm:$0xff] %vm23, 0.0
      %76 = vst.msk [vmem:[#allocation3 + $0xa0] sm:$0xff] %vm23, 0.0
      %77 = vst.msk [vmem:[#allocation3 + $0xa8] sm:$0xff] %vm23, 0.0
      %78 = vst.msk [vmem:[#allocation3 + $0xb0] sm:$0xff] %vm23, 0.0
      %79 = vst.msk [vmem:[#allocation3 + $0xb8] sm:$0xff] %vm23, 0.0
      %80 = vst.msk [vmem:[#allocation3 + $0xc0] sm:$0xff] %vm23, 0.0
      %81 = vst.msk [vmem:[#allocation3 + $0xc8] sm:$0xff] %vm23, 0.0
      %82 = vst.msk [vmem:[#allocation3 + $0xd0] sm:$0xff] %vm23, 0.0
      %83 = vst.msk [vmem:[#allocation3 + $0xd8] sm:$0xff] %vm23, 0.0
      %84 = vst.msk [vmem:[#allocation3 + $0xe0] sm:$0xff] %vm23, 0.0
      %85 = vst.msk [vmem:[#allocation3 + $0xe8] sm:$0xff] %vm23, 0.0
      %86 = vst.msk [vmem:[#allocation3 + $0xf0] sm:$0xff] %vm23, 0.0
      %87 = vst.msk [vmem:[#allocation3 + $0xf8] sm:$0xff] %vm23, 0.0
    $region17: #{tpu_custom_call.1} parent=1 // pred_fallthru
      _
    %v88 = vld [vmem:[%s1] sm:$0xf]
    %v89 = vld [vmem:[%s1 + $0x4] sm:$0xf]
    %v90 = vld [vmem:[%s1 + $0x8] sm:$0xf]
    %v91 = vld [vmem:[%s1 + $0xc] sm:$0xf]
    %v92 = vld [vmem:[%s1 + $0x10] sm:$0xf]
    %v93 = vld [vmem:[%s1 + $0x14] sm:$0xf]
    %v94 = vld [vmem:[%s1 + $0x18] sm:$0xf]
    %v95 = vld [vmem:[%s1 + $0x1c] sm:$0xf]
    %v96 = vld [vmem:[%s1 + $0x20] sm:$0xf]
    %v97 = vld [vmem:[%s1 + $0x24] sm:$0xf]
    %v98 = vld [vmem:[%s1 + $0x28] sm:$0xf]
    %v99 = vld [vmem:[%s1 + $0x2c] sm:$0xf]
    %v100 = vld [vmem:[%s1 + $0x30] sm:$0xf]
    %v101 = vld [vmem:[%s1 + $0x34] sm:$0xf]
    %v102 = vld [vmem:[%s1 + $0x38] sm:$0xf]
    %v103 = vld [vmem:[%s1 + $0x3c] sm:$0xf]
    %v104 = vld [vmem:[%s1 + $0x40] sm:$0xf]
    %v105 = vld [vmem:[%s1 + $0x44] sm:$0xf]
    %v106 = vld [vmem:[%s1 + $0x48] sm:$0xf]
    %v107 = vld [vmem:[%s1 + $0x4c] sm:$0xf]
    %v108 = vld [vmem:[%s1 + $0x50] sm:$0xf]
    %v109 = vld [vmem:[%s1 + $0x54] sm:$0xf]
    %v110 = vld [vmem:[%s1 + $0x58] sm:$0xf]
    %v111 = vld [vmem:[%s1 + $0x5c] sm:$0xf]
    %v112 = vld [vmem:[%s1 + $0x60] sm:$0xf]
    %v113 = vld [vmem:[%s1 + $0x64] sm:$0xf]
    %v114 = vld [vmem:[%s1 + $0x68] sm:$0xf]
    %v115 = vld [vmem:[%s1 + $0x6c] sm:$0xf]
    %v116 = vld [vmem:[%s1 + $0x70] sm:$0xf]
    %v117 = vld [vmem:[%s1 + $0x74] sm:$0xf]
    %v118 = vld [vmem:[%s1 + $0x78] sm:$0xf]
    %v119 = vld [vmem:[%s1 + $0x7c] sm:$0xf]
    %v120 = vld [vmem:[%s2] sm:$0xf]
    %v121 = vld [vmem:[%s2 + $0x4] sm:$0xf]
    %v122 = vld [vmem:[%s2 + $0x8] sm:$0xf]
    %v123 = vld [vmem:[%s2 + $0xc] sm:$0xf]
    %v124 = vld [vmem:[%s2 + $0x10] sm:$0xf]
    %v125 = vld [vmem:[%s2 + $0x14] sm:$0xf]
    %v126 = vld [vmem:[%s2 + $0x18] sm:$0xf]
    %v127 = vld [vmem:[%s2 + $0x1c] sm:$0xf]
    %v128 = vld [vmem:[%s2 + $0x20] sm:$0xf]
    %v129 = vld [vmem:[%s2 + $0x24] sm:$0xf]
    %v130 = vld [vmem:[%s2 + $0x28] sm:$0xf]
    %v131 = vld [vmem:[%s2 + $0x2c] sm:$0xf]
    %v132 = vld [vmem:[%s2 + $0x30] sm:$0xf]
    %v133 = vld [vmem:[%s2 + $0x34] sm:$0xf]
    %v134 = vld [vmem:[%s2 + $0x38] sm:$0xf]
    %v135 = vld [vmem:[%s2 + $0x3c] sm:$0xf]
    %v136 = vld [vmem:[%s2 + $0x40] sm:$0xf]
    %v137 = vld [vmem:[%s2 + $0x44] sm:$0xf]
    %v138 = vld [vmem:[%s2 + $0x48] sm:$0xf]
    %v139 = vld [vmem:[%s2 + $0x4c] sm:$0xf]
    %v140 = vld [vmem:[%s2 + $0x50] sm:$0xf]
    %v141 = vld [vmem:[%s2 + $0x54] sm:$0xf]
    %v142 = vld [vmem:[%s2 + $0x58] sm:$0xf]
    %v143 = vld [vmem:[%s2 + $0x5c] sm:$0xf]
    %v144 = vld [vmem:[%s2 + $0x60] sm:$0xf]
    %v145 = vld [vmem:[%s2 + $0x64] sm:$0xf]
    %v146 = vld [vmem:[%s2 + $0x68] sm:$0xf]
    %v147 = vld [vmem:[%s2 + $0x6c] sm:$0xf]
    %v148 = vld [vmem:[%s2 + $0x70] sm:$0xf]
    %v149 = vld [vmem:[%s2 + $0x74] sm:$0xf]
    %v150 = vld [vmem:[%s2 + $0x78] sm:$0xf]
    %v151 = vld [vmem:[%s2 + $0x7c] sm:$0xf]
    %v184 = vunpack.c.l.b16 %v88
    %v185 = vunpack.c.l.b16 %v89
    %v186 = vunpack.c.l.b16 %v90
    %v187 = vunpack.c.l.b16 %v91
    %v188 = vunpack.c.l.b16 %v92
    %v189 = vunpack.c.l.b16 %v93
    %v190 = vunpack.c.l.b16 %v94
    %v191 = vunpack.c.l.b16 %v95
    %v192 = vunpack.c.l.b16 %v96
    %v193 = vunpack.c.l.b16 %v97
    %v194 = vunpack.c.l.b16 %v98
    %v195 = vunpack.c.l.b16 %v99
    %v196 = vunpack.c.l.b16 %v100
    %v197 = vunpack.c.l.b16 %v101
    %v198 = vunpack.c.l.b16 %v102
    %v199 = vunpack.c.l.b16 %v103
    %v200 = vunpack.c.l.b16 %v104
    %v201 = vunpack.c.l.b16 %v105
    %v202 = vunpack.c.l.b16 %v106
    %v203 = vunpack.c.l.b16 %v107
    %v204 = vunpack.c.l.b16 %v108
    %v205 = vunpack.c.l.b16 %v109
    %v206 = vunpack.c.l.b16 %v110
    %v207 = vunpack.c.l.b16 %v111
    %v208 = vunpack.c.l.b16 %v112
    %v209 = vunpack.c.l.b16 %v113
    %v210 = vunpack.c.l.b16 %v114
    %v211 = vunpack.c.l.b16 %v115
    %v212 = vunpack.c.l.b16 %v116
    %v213 = vunpack.c.l.b16 %v117
    %v214 = vunpack.c.l.b16 %v118
    %v215 = vunpack.c.l.b16 %v119
    %v216 = vpack.c.b16 %v185, %v184
    %v217 = vpack.c.b16 %v187, %v186
    %v218 = vpack.c.b16 %v189, %v188
    %v219 = vpack.c.b16 %v191, %v190
    %v220 = vpack.c.b16 %v193, %v192
    %v221 = vpack.c.b16 %v195, %v194
    %v222 = vpack.c.b16 %v197, %v196
    %v223 = vpack.c.b16 %v199, %v198
    %v224 = vpack.c.b16 %v201, %v200
    %v225 = vpack.c.b16 %v203, %v202
    %v226 = vpack.c.b16 %v205, %v204
    %v227 = vpack.c.b16 %v207, %v206
    %v228 = vpack.c.b16 %v209, %v208
    %v229 = vpack.c.b16 %v211, %v210
    %v230 = vpack.c.b16 %v213, %v212
    %v231 = vpack.c.b16 %v215, %v214
    %v264 = vunpack.c.l.b16 %v120
    %v265 = vunpack.c.l.b16 %v121
    %v266 = vunpack.c.l.b16 %v122
    %v267 = vunpack.c.l.b16 %v123
    %v268 = vunpack.c.l.b16 %v124
    %v269 = vunpack.c.l.b16 %v125
    %v270 = vunpack.c.l.b16 %v126
    %v271 = vunpack.c.l.b16 %v127
    %v272 = vunpack.c.l.b16 %v128
    %v273 = vunpack.c.l.b16 %v129
    %v274 = vunpack.c.l.b16 %v130
    %v275 = vunpack.c.l.b16 %v131
    %v276 = vunpack.c.l.b16 %v132
    %v277 = vunpack.c.l.b16 %v133
    %v278 = vunpack.c.l.b16 %v134
    %v279 = vunpack.c.l.b16 %v135
    %v280 = vunpack.c.l.b16 %v136
    %v281 = vunpack.c.l.b16 %v137
    %v282 = vunpack.c.l.b16 %v138
    %v283 = vunpack.c.l.b16 %v139
    %v284 = vunpack.c.l.b16 %v140
    %v285 = vunpack.c.l.b16 %v141
    %v286 = vunpack.c.l.b16 %v142
    %v287 = vunpack.c.l.b16 %v143
    %v288 = vunpack.c.l.b16 %v144
    %v289 = vunpack.c.l.b16 %v145
    %v290 = vunpack.c.l.b16 %v146
    %v291 = vunpack.c.l.b16 %v147
    %v292 = vunpack.c.l.b16 %v148
    %v293 = vunpack.c.l.b16 %v149
    %v294 = vunpack.c.l.b16 %v150
    %v295 = vunpack.c.l.b16 %v151
    %v296 = vpack.c.b16 %v265, %v264
    %v297 = vpack.c.b16 %v267, %v266
    %v298 = vpack.c.b16 %v269, %v268
    %v299 = vpack.c.b16 %v271, %v270
    %v300 = vpack.c.b16 %v273, %v272
    %v301 = vpack.c.b16 %v275, %v274
    %v302 = vpack.c.b16 %v277, %v276
    %v303 = vpack.c.b16 %v279, %v278
    %v304 = vpack.c.b16 %v281, %v280
    %v305 = vpack.c.b16 %v283, %v282
    %v306 = vpack.c.b16 %v285, %v284
    %v307 = vpack.c.b16 %v287, %v286
    %v308 = vpack.c.b16 %v289, %v288
    %v309 = vpack.c.b16 %v291, %v290
    %v310 = vpack.c.b16 %v293, %v292
    %v311 = vpack.c.b16 %v295, %v294
    %vm312 = vcmask 523264
    %v314 = vsel %vm312, %v216, 0
    %v317 = vsel %vm312, %v217, 0
    %v320 = vsel %vm312, %v218, 0
    %v323 = vsel %vm312, %v219, 0
    %v326 = vsel %vm312, %v220, 0
    %v329 = vsel %vm312, %v221, 0
    %v332 = vsel %vm312, %v222, 0
    %v335 = vsel %vm312, %v223, 0
    %v338 = vsel %vm312, %v224, 0
    %v341 = vsel %vm312, %v225, 0
    %v344 = vsel %vm312, %v226, 0
    %v347 = vsel %vm312, %v227, 0
    %v350 = vsel %vm312, %v228, 0
    %v353 = vsel %vm312, %v229, 0
    %v356 = vsel %vm312, %v230, 0
    %v359 = vsel %vm312, %v231, 0
    %v362 = vsel %vm312, %v296, 0
    %v365 = vsel %vm312, %v297, 0
    %v368 = vsel %vm312, %v298, 0
    %v371 = vsel %vm312, %v299, 0
    %v374 = vsel %vm312, %v300, 0
    %v377 = vsel %vm312, %v301, 0
    %v380 = vsel %vm312, %v302, 0
    %v383 = vsel %vm312, %v303, 0
    %v386 = vsel %vm312, %v304, 0
    %v389 = vsel %vm312, %v305, 0
    %v392 = vsel %vm312, %v306, 0
    %v395 = vsel %vm312, %v307, 0
    %v398 = vsel %vm312, %v308, 0
    %v401 = vsel %vm312, %v309, 0
    %v404 = vsel %vm312, %v310, 0
    %v407 = vsel %vm312, %v311, 0
    %409 = vmatprep.subr.bf16.mxu0 0
    %410 = vmatpush1.bf16.xpose.msra.mxu0 %v362
    %411 = vmatprep.subr.bf16.mxu0 0
    %412 = vmatpush1.bf16.xpose.msra.mxu0 %v365
    %413 = vmatprep.subr.bf16.mxu0 0
    %414 = vmatpush1.bf16.xpose.msra.mxu0 %v368
    %415 = vmatprep.subr.bf16.mxu0 0
    %416 = vmatpush1.bf16.xpose.msra.mxu0 %v371
    %417 = vmatprep.subr.bf16.mxu0 0
    %418 = vmatpush1.bf16.xpose.msra.mxu0 %v374
    %419 = vmatprep.subr.bf16.mxu0 0
    %420 = vmatpush1.bf16.xpose.msra.mxu0 %v377
    %421 = vmatprep.subr.bf16.mxu0 0
    %422 = vmatpush1.bf16.xpose.msra.mxu0 %v380
    %423 = vmatprep.subr.bf16.mxu0 0
    %424 = vmatpush1.bf16.xpose.msra.mxu0 %v383
    %425 = vmatprep.subr.bf16.mxu0 0
    %426 = vmatpush1.bf16.xpose.msra.mxu0 %v386
    %427 = vmatprep.subr.bf16.mxu0 0
    %428 = vmatpush1.bf16.xpose.msra.mxu0 %v389
    %429 = vmatprep.subr.bf16.mxu0 0
    %430 = vmatpush1.bf16.xpose.msra.mxu0 %v392
    %431 = vmatprep.subr.bf16.mxu0 0
    %432 = vmatpush1.bf16.xpose.msra.mxu0 %v395
    %433 = vmatprep.subr.bf16.mxu0 0
    %434 = vmatpush1.bf16.xpose.msra.mxu0 %v398
    %435 = vmatprep.subr.bf16.mxu0 0
    %436 = vmatpush1.bf16.xpose.msra.mxu0 %v401
    %437 = vmatprep.subr.bf16.mxu0 0
    %438 = vmatpush1.bf16.xpose.msra.mxu0 %v404
    %439 = vmatprep.subr.bf16.mxu0 0
    %440 = vmatpush1.bf16.xpose.msra.mxu0 %v407
    %441 = vmatprep.mubr.bf16.mxu0 0
    %442 = vmatmul.mubr.bf16.gmra.mrb[0].mxu0 %v314
    %v443 = vpop.f32.mrb[0].mxu0
    %v444 = vadd.f32 0.0, %v443
    %v445 = vpop.f32.mrb[0].mxu0
    %v446 = vadd.f32 0.0, %v445
    %v447 = vpop.f32.mrb[0].mxu0
    %v448 = vadd.f32 0.0, %v447
    %v449 = vpop.f32.mrb[0].mxu0
    %v450 = vadd.f32 0.0, %v449
    %451 = vmatprep.mubr.bf16.mxu0 0
    %452 = vmatmul.mubr.bf16.gmra.mrb[0].mxu0 %v317
    %v453 = vpop.f32.mrb[0].mxu0
    %v454 = vadd.f32 0.0, %v453
    %v455 = vpop.f32.mrb[0].mxu0
    %v456 = vadd.f32 0.0, %v455
    %v457 = vpop.f32.mrb[0].mxu0
    %v458 = vadd.f32 0.0, %v457
    %v459 = vpop.f32.mrb[0].mxu0
    %v460 = vadd.f32 0.0, %v459
    %461 = vmatprep.mubr.bf16.mxu0 0
    %462 = vmatmul.mubr.bf16.gmra.mrb[0].mxu0 %v320
    %v463 = vpop.f32.mrb[0].mxu0
    %v464 = vadd.f32 0.0, %v463
    %v465 = vpop.f32.mrb[0].mxu0
    %v466 = vadd.f32 0.0, %v465
    %v467 = vpop.f32.mrb[0].mxu0
    %v468 = vadd.f32 0.0, %v467
    %v469 = vpop.f32.mrb[0].mxu0
    %v470 = vadd.f32 0.0, %v469
    %471 = vmatprep.mubr.bf16.mxu0 0
    %472 = vmatmul.mubr.bf16.gmra.mrb[0].mxu0 %v323
    %v473 = vpop.f32.mrb[0].mxu0
    %v474 = vadd.f32 0.0, %v473
    %v475 = vpop.f32.mrb[0].mxu0
    %v476 = vadd.f32 0.0, %v475
    %v477 = vpop.f32.mrb[0].mxu0
    %v478 = vadd.f32 0.0, %v477
    %v479 = vpop.f32.mrb[0].mxu0
    %v480 = vadd.f32 0.0, %v479
    %481 = vmatprep.mubr.bf16.mxu0 0
    %482 = vmatmul.mubr.bf16.gmra.mrb[0].mxu0 %v326
    %v483 = vpop.f32.mrb[0].mxu0
    %v484 = vadd.f32 0.0, %v483
    %v485 = vpop.f32.mrb[0].mxu0
    %v486 = vadd.f32 0.0, %v485
    %v487 = vpop.f32.mrb[0].mxu0
    %v488 = vadd.f32 0.0, %v487
    %v489 = vpop.f32.mrb[0].mxu0
    %v490 = vadd.f32 0.0, %v489
    %491 = vmatprep.mubr.bf16.mxu0 0
    %492 = vmatmul.mubr.bf16.gmra.mrb[0].mxu0 %v329
    %v493 = vpop.f32.mrb[0].mxu0
    %v494 = vadd.f32 0.0, %v493
    %v495 = vpop.f32.mrb[0].mxu0
    %v496 = vadd.f32 0.0, %v495
    %v497 = vpop.f32.mrb[0].mxu0
    %v498 = vadd.f32 0.0, %v497
    %v499 = vpop.f32.mrb[0].mxu0
    %v500 = vadd.f32 0.0, %v499
    %501 = vmatprep.mubr.bf16.mxu0 0
    %502 = vmatmul.mubr.bf16.gmra.mrb[0].mxu0 %v332
    %v503 = vpop.f32.mrb[0].mxu0
    %v504 = vadd.f32 0.0, %v503
    %v505 = vpop.f32.mrb[0].mxu0
    %v506 = vadd.f32 0.0, %v505
    %v507 = vpop.f32.mrb[0].mxu0
    %v508 = vadd.f32 0.0, %v507
    %v509 = vpop.f32.mrb[0].mxu0
    %v510 = vadd.f32 0.0, %v509
    %511 = vmatprep.mubr.bf16.mxu0 0
    %512 = vmatmul.mubr.bf16.gmra.mrb[0].mxu0 %v335
    %v513 = vpop.f32.mrb[0].mxu0
    %v514 = vadd.f32 0.0, %v513
    %v515 = vpop.f32.mrb[0].mxu0
    %v516 = vadd.f32 0.0, %v515
    %v517 = vpop.f32.mrb[0].mxu0
    %v518 = vadd.f32 0.0, %v517
    %v519 = vpop.f32.mrb[0].mxu0
    %v520 = vadd.f32 0.0, %v519
    %521 = vmatprep.mubr.bf16.mxu0 0
    %522 = vmatmul.mubr.bf16.gmra.mrb[0].mxu0 %v338
    %v523 = vpop.f32.mrb[0].mxu0
    %v524 = vadd.f32 0.0, %v523
    %v525 = vpop.f32.mrb[0].mxu0
    %v526 = vadd.f32 0.0, %v525
    %v527 = vpop.f32.mrb[0].mxu0
    %v528 = vadd.f32 0.0, %v527
    %v529 = vpop.f32.mrb[0].mxu0
    %v530 = vadd.f32 0.0, %v529
    %531 = vmatprep.mubr.bf16.mxu0 0
    %532 = vmatmul.mubr.bf16.gmra.mrb[0].mxu0 %v341
    %v533 = vpop.f32.mrb[0].mxu0
    %v534 = vadd.f32 0.0, %v533
    %v535 = vpop.f32.mrb[0].mxu0
    %v536 = vadd.f32 0.0, %v535
    %v537 = vpop.f32.mrb[0].mxu0
    %v538 = vadd.f32 0.0, %v537
    %v539 = vpop.f32.mrb[0].mxu0
    %v540 = vadd.f32 0.0, %v539
    %541 = vmatprep.mubr.bf16.mxu0 0
    %542 = vmatmul.mubr.bf16.gmra.mrb[0].mxu0 %v344
    %v543 = vpop.f32.mrb[0].mxu0
    %v544 = vadd.f32 0.0, %v543
    %v545 = vpop.f32.mrb[0].mxu0
    %v546 = vadd.f32 0.0, %v545
    %v547 = vpop.f32.mrb[0].mxu0
    %v548 = vadd.f32 0.0, %v547
    %v549 = vpop.f32.mrb[0].mxu0
    %v550 = vadd.f32 0.0, %v549
    %551 = vmatprep.mubr.bf16.mxu0 0
    %552 = vmatmul.mubr.bf16.gmra.mrb[0].mxu0 %v347
    %v553 = vpop.f32.mrb[0].mxu0
    %v554 = vadd.f32 0.0, %v553
    %v555 = vpop.f32.mrb[0].mxu0
    %v556 = vadd.f32 0.0, %v555
    %v557 = vpop.f32.mrb[0].mxu0
    %v558 = vadd.f32 0.0, %v557
    %v559 = vpop.f32.mrb[0].mxu0
    %v560 = vadd.f32 0.0, %v559
    %561 = vmatprep.mubr.bf16.mxu0 0
    %562 = vmatmul.mubr.bf16.gmra.mrb[0].mxu0 %v350
    %v563 = vpop.f32.mrb[0].mxu0
    %v564 = vadd.f32 0.0, %v563
    %v565 = vpop.f32.mrb[0].mxu0
    %v566 = vadd.f32 0.0, %v565
    %v567 = vpop.f32.mrb[0].mxu0
    %v568 = vadd.f32 0.0, %v567
    %v569 = vpop.f32.mrb[0].mxu0
    %v570 = vadd.f32 0.0, %v569
    %571 = vmatprep.mubr.bf16.mxu0 0
    %572 = vmatmul.mubr.bf16.gmra.mrb[0].mxu0 %v353
    %v573 = vpop.f32.mrb[0].mxu0
    %v574 = vadd.f32 0.0, %v573
    %v575 = vpop.f32.mrb[0].mxu0
    %v576 = vadd.f32 0.0, %v575
    %v577 = vpop.f32.mrb[0].mxu0
    %v578 = vadd.f32 0.0, %v577
    %v579 = vpop.f32.mrb[0].mxu0
    %v580 = vadd.f32 0.0, %v579
    %581 = vmatprep.mubr.bf16.mxu0 0
    %582 = vmatmul.mubr.bf16.gmra.mrb[0].mxu0 %v356
    %v583 = vpop.f32.mrb[0].mxu0
    %v584 = vadd.f32 0.0, %v583
    %v585 = vpop.f32.mrb[0].mxu0
    %v586 = vadd.f32 0.0, %v585
    %v587 = vpop.f32.mrb[0].mxu0
    %v588 = vadd.f32 0.0, %v587
    %v589 = vpop.f32.mrb[0].mxu0
    %v590 = vadd.f32 0.0, %v589
    %591 = vmatprep.mubr.bf16.mxu0 0
    %592 = vmatmul.mubr.bf16.gmra.mrb[0].mxu0 %v359
    %v593 = vpop.f32.mrb[0].mxu0
    %v594 = vadd.f32 0.0, %v593
    %v595 = vpop.f32.mrb[0].mxu0
    %v596 = vadd.f32 0.0, %v595
    %v597 = vpop.f32.mrb[0].mxu0
    %v598 = vadd.f32 0.0, %v597
    %v599 = vpop.f32.mrb[0].mxu0
    %v600 = vadd.f32 0.0, %v599
    %601 = vdwg.mxu0
    %s602 = sld [smem:[#allocation4]]
    %v603 = vstv %s602
    %v604 = vmul.f32 %v444, %v603
    %v605 = vmul.f32 %v446, %v603
    %v606 = vmul.f32 %v448, %v603
    %v607 = vmul.f32 %v450, %v603
    %v608 = vmul.f32 %v454, %v603
    %v609 = vmul.f32 %v456, %v603
    %v610 = vmul.f32 %v458, %v603
    %v611 = vmul.f32 %v460, %v603
    %v612 = vmul.f32 %v464, %v603
    %v613 = vmul.f32 %v466, %v603
    %v614 = vmul.f32 %v468, %v603
    %v615 = vmul.f32 %v470, %v603
    %v616 = vmul.f32 %v474, %v603
    %v617 = vmul.f32 %v476, %v603
    %v618 = vmul.f32 %v478, %v603
    %v619 = vmul.f32 %v480, %v603
    %v620 = vmul.f32 %v484, %v603
    %v621 = vmul.f32 %v486, %v603
    %v622 = vmul.f32 %v488, %v603
    %v623 = vmul.f32 %v490, %v603
    %v624 = vmul.f32 %v494, %v603
    %v625 = vmul.f32 %v496, %v603
    %v626 = vmul.f32 %v498, %v603
    %v627 = vmul.f32 %v500, %v603
    %v628 = vmul.f32 %v504, %v603
    %v629 = vmul.f32 %v506, %v603
    %v630 = vmul.f32 %v508, %v603
    %v631 = vmul.f32 %v510, %v603
    %v632 = vmul.f32 %v514, %v603
    %v633 = vmul.f32 %v516, %v603
    %v634 = vmul.f32 %v518, %v603
    %v635 = vmul.f32 %v520, %v603
    %v636 = vmul.f32 %v524, %v603
    %v637 = vmul.f32 %v526, %v603
    %v638 = vmul.f32 %v528, %v603
    %v639 = vmul.f32 %v530, %v603
    %v640 = vmul.f32 %v534, %v603
    %v641 = vmul.f32 %v536, %v603
    %v642 = vmul.f32 %v538, %v603
    %v643 = vmul.f32 %v540, %v603
    %v644 = vmul.f32 %v544, %v603
    %v645 = vmul.f32 %v546, %v603
    %v646 = vmul.f32 %v548, %v603
    %v647 = vmul.f32 %v550, %v603
    %v648 = vmul.f32 %v554, %v603
    %v649 = vmul.f32 %v556, %v603
    %v650 = vmul.f32 %v558, %v603
    %v651 = vmul.f32 %v560, %v603
    %v652 = vmul.f32 %v564, %v603
    %v653 = vmul.f32 %v566, %v603
    %v654 = vmul.f32 %v568, %v603
    %v655 = vmul.f32 %v570, %v603
    %v656 = vmul.f32 %v574, %v603
    %v657 = vmul.f32 %v576, %v603
    %v658 = vmul.f32 %v578, %v603
    %v659 = vmul.f32 %v580, %v603
    %v660 = vmul.f32 %v584, %v603
    %v661 = vmul.f32 %v586, %v603
    %v662 = vmul.f32 %v588, %v603
    %v663 = vmul.f32 %v590, %v603
    %v664 = vmul.f32 %v594, %v603
    %v665 = vmul.f32 %v596, %v603
    %v666 = vmul.f32 %v598, %v603
    %v667 = vmul.f32 %v600, %v603
    %s668 = smul.u32 0, 256
    %v669 = vlaneseq
    %v670 = vand.u32 %v669, 127
    %v671 = vadd.s32 %v670, 128
    %v672 = vstv %s668
    %v673 = vadd.s32 %v672, %v670
    %v674 = vadd.s32 %v672, %v671
    %s675 = smul.u32 0, 256
    %v676 = vlaneseq
    %v677 = vshrl.u32 %v676, 7
    %v678 = vadd.s32 %v677, 8
    %v679 = vadd.s32 %v677, 16
    %v680 = vadd.s32 %v677, 24
    %v681 = vadd.s32 %v677, 32
    %v682 = vadd.s32 %v677, 40
    %v683 = vadd.s32 %v677, 48
    %v684 = vadd.s32 %v677, 56
    %v685 = vadd.s32 %v677, 64
    %v686 = vadd.s32 %v677, 72
    %v687 = vadd.s32 %v677, 80
    %v688 = vadd.s32 %v677, 88
    %v689 = vadd.s32 %v677, 96
    %v690 = vadd.s32 %v677, 104
    %v691 = vadd.s32 %v677, 112
    %v692 = vadd.s32 %v677, 120
    %v693 = vadd.s32 %v677, 128
    %v694 = vadd.s32 %v677, 136
    %v695 = vadd.s32 %v677, 144
    %v696 = vadd.s32 %v677, 152
    %v697 = vadd.s32 %v677, 160
    %v698 = vadd.s32 %v677, 168
    %v699 = vadd.s32 %v677, 176
    %v700 = vadd.s32 %v677, 184
    %v701 = vadd.s32 %v677, 192
    %v702 = vadd.s32 %v677, 200
    %v703 = vadd.s32 %v677, 208
    %v704 = vadd.s32 %v677, 216
    %v705 = vadd.s32 %v677, 224
    %v706 = vadd.s32 %v677, 232
    %v707 = vadd.s32 %v677, 240
    %v708 = vadd.s32 %v677, 248
    %v709 = vstv %s675
    %v710 = vadd.s32 %v709, %v677
    %v711 = vadd.s32 %v709, %v678
    %v712 = vadd.s32 %v709, %v679
    %v713 = vadd.s32 %v709, %v680
    %v714 = vadd.s32 %v709, %v681
    %v715 = vadd.s32 %v709, %v682
    %v716 = vadd.s32 %v709, %v683
    %v717 = vadd.s32 %v709, %v684
    %v718 = vadd.s32 %v709, %v685
    %v719 = vadd.s32 %v709, %v686
    %v720 = vadd.s32 %v709, %v687
    %v721 = vadd.s32 %v709, %v688
    %v722 = vadd.s32 %v709, %v689
    %v723 = vadd.s32 %v709, %v690
    %v724 = vadd.s32 %v709, %v691
    %v725 = vadd.s32 %v709, %v692
    %v726 = vadd.s32 %v709, %v693
    %v727 = vadd.s32 %v709, %v694
    %v728 = vadd.s32 %v709, %v695
    %v729 = vadd.s32 %v709, %v696
    %v730 = vadd.s32 %v709, %v697
    %v731 = vadd.s32 %v709, %v698
    %v732 = vadd.s32 %v709, %v699
    %v733 = vadd.s32 %v709, %v700
    %v734 = vadd.s32 %v709, %v701
    %v735 = vadd.s32 %v709, %v702
    %v736 = vadd.s32 %v709, %v703
    %v737 = vadd.s32 %v709, %v704
    %v738 = vadd.s32 %v709, %v705
    %v739 = vadd.s32 %v709, %v706
    %v740 = vadd.s32 %v709, %v707
    %v741 = vadd.s32 %v709, %v708
    %vm742 = vcmp.lt.s32.totalorder %v673, 200
    %vm743 = vcmp.lt.s32.totalorder %v674, 200
    %v744 = vsel %vm742, 1, 0
    %v745 = vsel %vm743, 1, 0
    %vm746 = vcmp.eq.s32.totalorder %v744, 1
    %vm747 = vcmp.eq.s32.totalorder %v745, 1
    %v748 = vsel %vm746, %v604, -1e+30
    %v749 = vsel %vm747, %v605, -1e+30
    %v750 = vsel %vm746, %v606, -1e+30
    %v751 = vsel %vm747, %v607, -1e+30
    %v752 = vsel %vm746, %v608, -1e+30
    %v753 = vsel %vm747, %v609, -1e+30
    %v754 = vsel %vm746, %v610, -1e+30
    %v755 = vsel %vm747, %v611, -1e+30
    %v756 = vsel %vm746, %v612, -1e+30
    %v757 = vsel %vm747, %v613, -1e+30
    %v758 = vsel %vm746, %v614, -1e+30
    %v759 = vsel %vm747, %v615, -1e+30
    %v760 = vsel %vm746, %v616, -1e+30
    %v761 = vsel %vm747, %v617, -1e+30
    %v762 = vsel %vm746, %v618, -1e+30
    %v763 = vsel %vm747, %v619, -1e+30
    %v764 = vsel %vm746, %v620, -1e+30
    %v765 = vsel %vm747, %v621, -1e+30
    %v766 = vsel %vm746, %v622, -1e+30
    %v767 = vsel %vm747, %v623, -1e+30
    %v768 = vsel %vm746, %v624, -1e+30
    %v769 = vsel %vm747, %v625, -1e+30
    %v770 = vsel %vm746, %v626, -1e+30
    %v771 = vsel %vm747, %v627, -1e+30
    %v772 = vsel %vm746, %v628, -1e+30
    %v773 = vsel %vm747, %v629, -1e+30
    %v774 = vsel %vm746, %v630, -1e+30
    %v775 = vsel %vm747, %v631, -1e+30
    %v776 = vsel %vm746, %v632, -1e+30
    %v777 = vsel %vm747, %v633, -1e+30
    %v778 = vsel %vm746, %v634, -1e+30
    %v779 = vsel %vm747, %v635, -1e+30
    %v780 = vsel %vm746, %v636, -1e+30
    %v781 = vsel %vm747, %v637, -1e+30
    %v782 = vsel %vm746, %v638, -1e+30
    %v783 = vsel %vm747, %v639, -1e+30
    %v784 = vsel %vm746, %v640, -1e+30
    %v785 = vsel %vm747, %v641, -1e+30
    %v786 = vsel %vm746, %v642, -1e+30
    %v787 = vsel %vm747, %v643, -1e+30
    %v788 = vsel %vm746, %v644, -1e+30
    %v789 = vsel %vm747, %v645, -1e+30
    %v790 = vsel %vm746, %v646, -1e+30
    %v791 = vsel %vm747, %v647, -1e+30
    %v792 = vsel %vm746, %v648, -1e+30
    %v793 = vsel %vm747, %v649, -1e+30
    %v794 = vsel %vm746, %v650, -1e+30
    %v795 = vsel %vm747, %v651, -1e+30
    %v796 = vsel %vm746, %v652, -1e+30
    %v797 = vsel %vm747, %v653, -1e+30
    %v798 = vsel %vm746, %v654, -1e+30
    %v799 = vsel %vm747, %v655, -1e+30
    %v800 = vsel %vm746, %v656, -1e+30
    %v801 = vsel %vm747, %v657, -1e+30
    %v802 = vsel %vm746, %v658, -1e+30
    %v803 = vsel %vm747, %v659, -1e+30
    %v804 = vsel %vm746, %v660, -1e+30
    %v805 = vsel %vm747, %v661, -1e+30
    %v806 = vsel %vm746, %v662, -1e+30
    %v807 = vsel %vm747, %v663, -1e+30
    %v808 = vsel %vm746, %v664, -1e+30
    %v809 = vsel %vm747, %v665, -1e+30
    %v810 = vsel %vm746, %v666, -1e+30
    %v811 = vsel %vm747, %v667, -1e+30
    %vm812 = vcmp.lt.s32.totalorder %v710, 200
    %vm813 = vcmp.lt.s32.totalorder %v711, 200
    %vm814 = vcmp.lt.s32.totalorder %v712, 200
    %vm815 = vcmp.lt.s32.totalorder %v713, 200
    %vm816 = vcmp.lt.s32.totalorder %v714, 200
    %vm817 = vcmp.lt.s32.totalorder %v715, 200
    %vm818 = vcmp.lt.s32.totalorder %v716, 200
    %vm819 = vcmp.lt.s32.totalorder %v717, 200
    %vm820 = vcmp.lt.s32.totalorder %v718, 200
    %vm821 = vcmp.lt.s32.totalorder %v719, 200
    %vm822 = vcmp.lt.s32.totalorder %v720, 200
    %vm823 = vcmp.lt.s32.totalorder %v721, 200
    %vm824 = vcmp.lt.s32.totalorder %v722, 200
    %vm825 = vcmp.lt.s32.totalorder %v723, 200
    %vm826 = vcmp.lt.s32.totalorder %v724, 200
    %vm827 = vcmp.lt.s32.totalorder %v725, 200
    %vm828 = vcmp.lt.s32.totalorder %v726, 200
    %vm829 = vcmp.lt.s32.totalorder %v727, 200
    %vm830 = vcmp.lt.s32.totalorder %v728, 200
    %vm831 = vcmp.lt.s32.totalorder %v729, 200
    %vm832 = vcmp.lt.s32.totalorder %v730, 200
    %vm833 = vcmp.lt.s32.totalorder %v731, 200
    %vm834 = vcmp.lt.s32.totalorder %v732, 200
    %vm835 = vcmp.lt.s32.totalorder %v733, 200
    %vm836 = vcmp.lt.s32.totalorder %v734, 200
    %vm837 = vcmp.lt.s32.totalorder %v735, 200
    %vm838 = vcmp.lt.s32.totalorder %v736, 200
    %vm839 = vcmp.lt.s32.totalorder %v737, 200
    %vm840 = vcmp.lt.s32.totalorder %v738, 200
    %vm841 = vcmp.lt.s32.totalorder %v739, 200
    %vm842 = vcmp.lt.s32.totalorder %v740, 200
    %vm843 = vcmp.lt.s32.totalorder %v741, 200
    %v844 = vsel %vm812, 1, 0
    %v845 = vsel %vm813, 1, 0
    %v846 = vsel %vm814, 1, 0
    %v847 = vsel %vm815, 1, 0
    %v848 = vsel %vm816, 1, 0
    %v849 = vsel %vm817, 1, 0
    %v850 = vsel %vm818, 1, 0
    %v851 = vsel %vm819, 1, 0
    %v852 = vsel %vm820, 1, 0
    %v853 = vsel %vm821, 1, 0
    %v854 = vsel %vm822, 1, 0
    %v855 = vsel %vm823, 1, 0
    %v856 = vsel %vm824, 1, 0
    %v857 = vsel %vm825, 1, 0
    %v858 = vsel %vm826, 1, 0
    %v859 = vsel %vm827, 1, 0
    %v860 = vsel %vm828, 1, 0
    %v861 = vsel %vm829, 1, 0
    %v862 = vsel %vm830, 1, 0
    %v863 = vsel %vm831, 1, 0
    %v864 = vsel %vm832, 1, 0
    %v865 = vsel %vm833, 1, 0
    %v866 = vsel %vm834, 1, 0
    %v867 = vsel %vm835, 1, 0
    %v868 = vsel %vm836, 1, 0
    %v869 = vsel %vm837, 1, 0
    %v870 = vsel %vm838, 1, 0
    %v871 = vsel %vm839, 1, 0
    %v872 = vsel %vm840, 1, 0
    %v873 = vsel %vm841, 1, 0
    %v874 = vsel %vm842, 1, 0
    %v875 = vsel %vm843, 1, 0
    %vm876 = vcmp.eq.s32.totalorder %v844, 1
    %vm877 = vcmp.eq.s32.totalorder %v845, 1
    %vm878 = vcmp.eq.s32.totalorder %v846, 1
    %vm879 = vcmp.eq.s32.totalorder %v847, 1
    %vm880 = vcmp.eq.s32.totalorder %v848, 1
    %vm881 = vcmp.eq.s32.totalorder %v849, 1
    %vm882 = vcmp.eq.s32.totalorder %v850, 1
    %vm883 = vcmp.eq.s32.totalorder %v851, 1
    %vm884 = vcmp.eq.s32.totalorder %v852, 1
    %vm885 = vcmp.eq.s32.totalorder %v853, 1
    %vm886 = vcmp.eq.s32.totalorder %v854, 1
    %vm887 = vcmp.eq.s32.totalorder %v855, 1
    %vm888 = vcmp.eq.s32.totalorder %v856, 1
    %vm889 = vcmp.eq.s32.totalorder %v857, 1
    %vm890 = vcmp.eq.s32.totalorder %v858, 1
    %vm891 = vcmp.eq.s32.totalorder %v859, 1
    %vm892 = vcmp.eq.s32.totalorder %v860, 1
    %vm893 = vcmp.eq.s32.totalorder %v861, 1
    %vm894 = vcmp.eq.s32.totalorder %v862, 1
    %vm895 = vcmp.eq.s32.totalorder %v863, 1
    %vm896 = vcmp.eq.s32.totalorder %v864, 1
    %vm897 = vcmp.eq.s32.totalorder %v865, 1
    %vm898 = vcmp.eq.s32.totalorder %v866, 1
    %vm899 = vcmp.eq.s32.totalorder %v867, 1
    %vm900 = vcmp.eq.s32.totalorder %v868, 1
    %vm901 = vcmp.eq.s32.totalorder %v869, 1
    %vm902 = vcmp.eq.s32.totalorder %v870, 1
    %vm903 = vcmp.eq.s32.totalorder %v871, 1
    %vm904 = vcmp.eq.s32.totalorder %v872, 1
    %vm905 = vcmp.eq.s32.totalorder %v873, 1
    %vm906 = vcmp.eq.s32.totalorder %v874, 1
    %vm907 = vcmp.eq.s32.totalorder %v875, 1
    %v908 = vsel %vm876, %v748, -1e+30
    %v909 = vsel %vm876, %v749, -1e+30
    %v910 = vsel %vm877, %v750, -1e+30
    %v911 = vsel %vm877, %v751, -1e+30
    %v912 = vsel %vm878, %v752, -1e+30
    %v913 = vsel %vm878, %v753, -1e+30
    %v914 = vsel %vm879, %v754, -1e+30
    %v915 = vsel %vm879, %v755, -1e+30
    %v916 = vsel %vm880, %v756, -1e+30
    %v917 = vsel %vm880, %v757, -1e+30
    %v918 = vsel %vm881, %v758, -1e+30
    %v919 = vsel %vm881, %v759, -1e+30
    %v920 = vsel %vm882, %v760, -1e+30
    %v921 = vsel %vm882, %v761, -1e+30
    %v922 = vsel %vm883, %v762, -1e+30
    %v923 = vsel %vm883, %v763, -1e+30
    %v924 = vsel %vm884, %v764, -1e+30
    %v925 = vsel %vm884, %v765, -1e+30
    %v926 = vsel %vm885, %v766, -1e+30
    %v927 = vsel %vm885, %v767, -1e+30
    %v928 = vsel %vm886, %v768, -1e+30
    %v929 = vsel %vm886, %v769, -1e+30
    %v930 = vsel %vm887, %v770, -1e+30
    %v931 = vsel %vm887, %v771, -1e+30
    %v932 = vsel %vm888, %v772, -1e+30
    %v933 = vsel %vm888, %v773, -1e+30
    %v934 = vsel %vm889, %v774, -1e+30
    %v935 = vsel %vm889, %v775, -1e+30
    %v936 = vsel %vm890, %v776, -1e+30
    %v937 = vsel %vm890, %v777, -1e+30
    %v938 = vsel %vm891, %v778, -1e+30
    %v939 = vsel %vm891, %v779, -1e+30
    %v940 = vsel %vm892, %v780, -1e+30
    %v941 = vsel %vm892, %v781, -1e+30
    %v942 = vsel %vm893, %v782, -1e+30
    %v943 = vsel %vm893, %v783, -1e+30
    %v944 = vsel %vm894, %v784, -1e+30
    %v945 = vsel %vm894, %v785, -1e+30
    %v946 = vsel %vm895, %v786, -1e+30
    %v947 = vsel %vm895, %v787, -1e+30
    %v948 = vsel %vm896, %v788, -1e+30
    %v949 = vsel %vm896, %v789, -1e+30
    %v950 = vsel %vm897, %v790, -1e+30
    %v951 = vsel %vm897, %v791, -1e+30
    %v952 = vsel %vm898, %v792, -1e+30
    %v953 = vsel %vm898, %v793, -1e+30
    %v954 = vsel %vm899, %v794, -1e+30
    %v955 = vsel %vm899, %v795, -1e+30
    %v956 = vsel %vm900, %v796, -1e+30
    %v957 = vsel %vm900, %v797, -1e+30
    %v958 = vsel %vm901, %v798, -1e+30
    %v959 = vsel %vm901, %v799, -1e+30
    %v960 = vsel %vm902, %v800, -1e+30
    %v961 = vsel %vm902, %v801, -1e+30
    %v962 = vsel %vm903, %v802, -1e+30
    %v963 = vsel %vm903, %v803, -1e+30
    %v964 = vsel %vm904, %v804, -1e+30
    %v965 = vsel %vm904, %v805, -1e+30
    %v966 = vsel %vm905, %v806, -1e+30
    %v967 = vsel %vm905, %v807, -1e+30
    %v968 = vsel %vm906, %v808, -1e+30
    %v969 = vsel %vm906, %v809, -1e+30
    %v970 = vsel %vm907, %v810, -1e+30
    %v971 = vsel %vm907, %v811, -1e+30
    %v972 = vld [vmem:[#allocation2] sm:$0xff]
    %v973 = vld [vmem:[#allocation2 + $0x8] sm:$0xff]
    %v974 = vld [vmem:[#allocation2 + $0x10] sm:$0xff]
    %v975 = vld [vmem:[#allocation2 + $0x18] sm:$0xff]
    %v976 = vld [vmem:[#allocation2 + $0x20] sm:$0xff]
    %v977 = vld [vmem:[#allocation2 + $0x28] sm:$0xff]
    %v978 = vld [vmem:[#allocation2 + $0x30] sm:$0xff]
    %v979 = vld [vmem:[#allocation2 + $0x38] sm:$0xff]
    %v980 = vld [vmem:[#allocation2 + $0x40] sm:$0xff]
    %v981 = vld [vmem:[#allocation2 + $0x48] sm:$0xff]
    %v982 = vld [vmem:[#allocation2 + $0x50] sm:$0xff]
    %v983 = vld [vmem:[#allocation2 + $0x58] sm:$0xff]
    %v984 = vld [vmem:[#allocation2 + $0x60] sm:$0xff]
    %v985 = vld [vmem:[#allocation2 + $0x68] sm:$0xff]
    %v986 = vld [vmem:[#allocation2 + $0x70] sm:$0xff]
    %v987 = vld [vmem:[#allocation2 + $0x78] sm:$0xff]
    %v988 = vld [vmem:[#allocation2 + $0x80] sm:$0xff]
    %v989 = vld [vmem:[#allocation2 + $0x88] sm:$0xff]
    %v990 = vld [vmem:[#allocation2 + $0x90] sm:$0xff]
    %v991 = vld [vmem:[#allocation2 + $0x98] sm:$0xff]
    %v992 = vld [vmem:[#allocation2 + $0xa0] sm:$0xff]
    %v993 = vld [vmem:[#allocation2 + $0xa8] sm:$0xff]
    %v994 = vld [vmem:[#allocation2 + $0xb0] sm:$0xff]
    %v995 = vld [vmem:[#allocation2 + $0xb8] sm:$0xff]
    %v996 = vld [vmem:[#allocation2 + $0xc0] sm:$0xff]
    %v997 = vld [vmem:[#allocation2 + $0xc8] sm:$0xff]
    %v998 = vld [vmem:[#allocation2 + $0xd0] sm:$0xff]
    %v999 = vld [vmem:[#allocation2 + $0xd8] sm:$0xff]
    %v1000 = vld [vmem:[#allocation2 + $0xe0] sm:$0xff]
    %v1001 = vld [vmem:[#allocation2 + $0xe8] sm:$0xff]
    %v1002 = vld [vmem:[#allocation2 + $0xf0] sm:$0xff]
    %v1003 = vld [vmem:[#allocation2 + $0xf8] sm:$0xff]
    %v1004 = vmax.f32 %v908, %v909
    %1005 = vmax.xlane.f32.xlu0 %v1004
    %v1006 = vpop.xlane.xlu0 %1005
    %v1007 = vmax.f32 %v910, %v911
    %1008 = vmax.xlane.f32.xlu0 %v1007
    %v1009 = vpop.xlane.xlu0 %1008
    %v1010 = vmax.f32 %v912, %v913
    %1011 = vmax.xlane.f32.xlu0 %v1010
    %v1012 = vpop.xlane.xlu0 %1011
    %v1013 = vmax.f32 %v914, %v915
    %1014 = vmax.xlane.f32.xlu0 %v1013
    %v1015 = vpop.xlane.xlu0 %1014
    %v1016 = vmax.f32 %v916, %v917
    %1017 = vmax.xlane.f32.xlu0 %v1016
    %v1018 = vpop.xlane.xlu0 %1017
    %v1019 = vmax.f32 %v918, %v919
    %1020 = vmax.xlane.f32.xlu0 %v1019
    %v1021 = vpop.xlane.xlu0 %1020
    %v1022 = vmax.f32 %v920, %v921
    %1023 = vmax.xlane.f32.xlu0 %v1022
    %v1024 = vpop.xlane.xlu0 %1023
    %v1025 = vmax.f32 %v922, %v923
    %1026 = vmax.xlane.f32.xlu0 %v1025
    %v1027 = vpop.xlane.xlu0 %1026
    %v1028 = vmax.f32 %v924, %v925
    %1029 = vmax.xlane.f32.xlu0 %v1028
    %v1030 = vpop.xlane.xlu0 %1029
    %v1031 = vmax.f32 %v926, %v927
    %1032 = vmax.xlane.f32.xlu0 %v1031
    %v1033 = vpop.xlane.xlu0 %1032
    %v1034 = vmax.f32 %v928, %v929
    %1035 = vmax.xlane.f32.xlu0 %v1034
    %v1036 = vpop.xlane.xlu0 %1035
    %v1037 = vmax.f32 %v930, %v931
    %1038 = vmax.xlane.f32.xlu0 %v1037
    %v1039 = vpop.xlane.xlu0 %1038
    %v1040 = vmax.f32 %v932, %v933
    %1041 = vmax.xlane.f32.xlu0 %v1040
    %v1042 = vpop.xlane.xlu0 %1041
    %v1043 = vmax.f32 %v934, %v935
    %1044 = vmax.xlane.f32.xlu0 %v1043
    %v1045 = vpop.xlane.xlu0 %1044
    %v1046 = vmax.f32 %v936, %v937
    %1047 = vmax.xlane.f32.xlu0 %v1046
    %v1048 = vpop.xlane.xlu0 %1047
    %v1049 = vmax.f32 %v938, %v939
    %1050 = vmax.xlane.f32.xlu0 %v1049
    %v1051 = vpop.xlane.xlu0 %1050
    %v1052 = vmax.f32 %v940, %v941
    %1053 = vmax.xlane.f32.xlu0 %v1052
    %v1054 = vpop.xlane.xlu0 %1053
    %v1055 = vmax.f32 %v942, %v943
    %1056 = vmax.xlane.f32.xlu0 %v1055
    %v1057 = vpop.xlane.xlu0 %1056
    %v1058 = vmax.f32 %v944, %v945
    %1059 = vmax.xlane.f32.xlu0 %v1058
    %v1060 = vpop.xlane.xlu0 %1059
    %v1061 = vmax.f32 %v946, %v947
    %1062 = vmax.xlane.f32.xlu0 %v1061
    %v1063 = vpop.xlane.xlu0 %1062
    %v1064 = vmax.f32 %v948, %v949
    %1065 = vmax.xlane.f32.xlu0 %v1064
    %v1066 = vpop.xlane.xlu0 %1065
    %v1067 = vmax.f32 %v950, %v951
    %1068 = vmax.xlane.f32.xlu0 %v1067
    %v1069 = vpop.xlane.xlu0 %1068
    %v1070 = vmax.f32 %v952, %v953
    %1071 = vmax.xlane.f32.xlu0 %v1070
    %v1072 = vpop.xlane.xlu0 %1071
    %v1073 = vmax.f32 %v954, %v955
    %1074 = vmax.xlane.f32.xlu0 %v1073
    %v1075 = vpop.xlane.xlu0 %1074
    %v1076 = vmax.f32 %v956, %v957
    %1077 = vmax.xlane.f32.xlu0 %v1076
    %v1078 = vpop.xlane.xlu0 %1077
    %v1079 = vmax.f32 %v958, %v959
    %1080 = vmax.xlane.f32.xlu0 %v1079
    %v1081 = vpop.xlane.xlu0 %1080
    %v1082 = vmax.f32 %v960, %v961
    %1083 = vmax.xlane.f32.xlu0 %v1082
    %v1084 = vpop.xlane.xlu0 %1083
    %v1085 = vmax.f32 %v962, %v963
    %1086 = vmax.xlane.f32.xlu0 %v1085
    %v1087 = vpop.xlane.xlu0 %1086
    %v1088 = vmax.f32 %v964, %v965
    %1089 = vmax.xlane.f32.xlu0 %v1088
    %v1090 = vpop.xlane.xlu0 %1089
    %v1091 = vmax.f32 %v966, %v967
    %1092 = vmax.xlane.f32.xlu0 %v1091
    %v1093 = vpop.xlane.xlu0 %1092
    %v1094 = vmax.f32 %v968, %v969
    %1095 = vmax.xlane.f32.xlu0 %v1094
    %v1096 = vpop.xlane.xlu0 %1095
    %v1097 = vmax.f32 %v970, %v971
    %1098 = vmax.xlane.f32.xlu0 %v1097
    %v1099 = vpop.xlane.xlu0 %1098
    %v1100 = vmax.f32 %v972, %v1006
    %v1101 = vmax.f32 %v973, %v1009
    %v1102 = vmax.f32 %v974, %v1012
    %v1103 = vmax.f32 %v975, %v1015
    %v1104 = vmax.f32 %v976, %v1018
    %v1105 = vmax.f32 %v977, %v1021
    %v1106 = vmax.f32 %v978, %v1024
    %v1107 = vmax.f32 %v979, %v1027
    %v1108 = vmax.f32 %v980, %v1030
    %v1109 = vmax.f32 %v981, %v1033
    %v1110 = vmax.f32 %v982, %v1036
    %v1111 = vmax.f32 %v983, %v1039
    %v1112 = vmax.f32 %v984, %v1042
    %v1113 = vmax.f32 %v985, %v1045
    %v1114 = vmax.f32 %v986, %v1048
    %v1115 = vmax.f32 %v987, %v1051
    %v1116 = vmax.f32 %v988, %v1054
    %v1117 = vmax.f32 %v989, %v1057
    %v1118 = vmax.f32 %v990, %v1060
    %v1119 = vmax.f32 %v991, %v1063
    %v1120 = vmax.f32 %v992, %v1066
    %v1121 = vmax.f32 %v993, %v1069
    %v1122 = vmax.f32 %v994, %v1072
    %v1123 = vmax.f32 %v995, %v1075
    %v1124 = vmax.f32 %v996, %v1078
    %v1125 = vmax.f32 %v997, %v1081
    %v1126 = vmax.f32 %v998, %v1084
    %v1127 = vmax.f32 %v999, %v1087
    %v1128 = vmax.f32 %v1000, %v1090
    %v1129 = vmax.f32 %v1001, %v1093
    %v1130 = vmax.f32 %v1002, %v1096
    %v1131 = vmax.f32 %v1003, %v1099
    %1133 = vset.pattern.permute.xlu0 0
    %1134 = vperm.xlu0 %1133, %v1100
    %v1135 = vpop.permute.xlu0 %1134
    %1138 = vset.pattern.permute.xlu0 0
    %1139 = vperm.xlu0 %1138, %v1101
    %v1140 = vpop.permute.xlu0 %1139
    %1143 = vset.pattern.permute.xlu0 0
    %1144 = vperm.xlu0 %1143, %v1102
    %v1145 = vpop.permute.xlu0 %1144
    %1148 = vset.pattern.permute.xlu0 0
    %1149 = vperm.xlu0 %1148, %v1103
    %v1150 = vpop.permute.xlu0 %1149
    %1153 = vset.pattern.permute.xlu0 0
    %1154 = vperm.xlu0 %1153, %v1104
    %v1155 = vpop.permute.xlu0 %1154
    %1158 = vset.pattern.permute.xlu0 0
    %1159 = vperm.xlu0 %1158, %v1105
    %v1160 = vpop.permute.xlu0 %1159
    %1163 = vset.pattern.permute.xlu0 0
    %1164 = vperm.xlu0 %1163, %v1106
    %v1165 = vpop.permute.xlu0 %1164
    %1168 = vset.pattern.permute.xlu0 0
    %1169 = vperm.xlu0 %1168, %v1107
    %v1170 = vpop.permute.xlu0 %1169
    %1173 = vset.pattern.permute.xlu0 0
    %1174 = vperm.xlu0 %1173, %v1108
    %v1175 = vpop.permute.xlu0 %1174
    %1178 = vset.pattern.permute.xlu0 0
    %1179 = vperm.xlu0 %1178, %v1109
    %v1180 = vpop.permute.xlu0 %1179
    %1183 = vset.pattern.permute.xlu0 0
    %1184 = vperm.xlu0 %1183, %v1110
    %v1185 = vpop.permute.xlu0 %1184
    %1188 = vset.pattern.permute.xlu0 0
    %1189 = vperm.xlu0 %1188, %v1111
    %v1190 = vpop.permute.xlu0 %1189
    %1193 = vset.pattern.permute.xlu0 0
    %1194 = vperm.xlu0 %1193, %v1112
    %v1195 = vpop.permute.xlu0 %1194
    %1198 = vset.pattern.permute.xlu0 0
    %1199 = vperm.xlu0 %1198, %v1113
    %v1200 = vpop.permute.xlu0 %1199
    %1203 = vset.pattern.permute.xlu0 0
    %1204 = vperm.xlu0 %1203, %v1114
    %v1205 = vpop.permute.xlu0 %1204
    %1208 = vset.pattern.permute.xlu0 0
    %1209 = vperm.xlu0 %1208, %v1115
    %v1210 = vpop.permute.xlu0 %1209
    %1213 = vset.pattern.permute.xlu0 0
    %1214 = vperm.xlu0 %1213, %v1116
    %v1215 = vpop.permute.xlu0 %1214
    %1218 = vset.pattern.permute.xlu0 0
    %1219 = vperm.xlu0 %1218, %v1117
    %v1220 = vpop.permute.xlu0 %1219
    %1223 = vset.pattern.permute.xlu0 0
    %1224 = vperm.xlu0 %1223, %v1118
    %v1225 = vpop.permute.xlu0 %1224
    %1228 = vset.pattern.permute.xlu0 0
    %1229 = vperm.xlu0 %1228, %v1119
    %v1230 = vpop.permute.xlu0 %1229
    %1233 = vset.pattern.permute.xlu0 0
    %1234 = vperm.xlu0 %1233, %v1120
    %v1235 = vpop.permute.xlu0 %1234
    %1238 = vset.pattern.permute.xlu0 0
    %1239 = vperm.xlu0 %1238, %v1121
    %v1240 = vpop.permute.xlu0 %1239
    %1243 = vset.pattern.permute.xlu0 0
    %1244 = vperm.xlu0 %1243, %v1122
    %v1245 = vpop.permute.xlu0 %1244
    %1248 = vset.pattern.permute.xlu0 0
    %1249 = vperm.xlu0 %1248, %v1123
    %v1250 = vpop.permute.xlu0 %1249
    %1253 = vset.pattern.permute.xlu0 0
    %1254 = vperm.xlu0 %1253, %v1124
    %v1255 = vpop.permute.xlu0 %1254
    %1258 = vset.pattern.permute.xlu0 0
    %1259 = vperm.xlu0 %1258, %v1125
    %v1260 = vpop.permute.xlu0 %1259
    %1263 = vset.pattern.permute.xlu0 0
    %1264 = vperm.xlu0 %1263, %v1126
    %v1265 = vpop.permute.xlu0 %1264
    %1268 = vset.pattern.permute.xlu0 0
    %1269 = vperm.xlu0 %1268, %v1127
    %v1270 = vpop.permute.xlu0 %1269
    %1273 = vset.pattern.permute.xlu0 0
    %1274 = vperm.xlu0 %1273, %v1128
    %v1275 = vpop.permute.xlu0 %1274
    %1278 = vset.pattern.permute.xlu0 0
    %1279 = vperm.xlu0 %1278, %v1129
    %v1280 = vpop.permute.xlu0 %1279
    %1283 = vset.pattern.permute.xlu0 0
    %1284 = vperm.xlu0 %1283, %v1130
    %v1285 = vpop.permute.xlu0 %1284
    %1288 = vset.pattern.permute.xlu0 0
    %1289 = vperm.xlu0 %1288, %v1131
    %v1290 = vpop.permute.xlu0 %1289
    %v1292 = vsub.f32 %v908, %v1135
    %v1293 = vsub.f32 %v909, %v1135
    %v1294 = vsub.f32 %v910, %v1140
    %v1295 = vsub.f32 %v911, %v1140
    %v1296 = vsub.f32 %v912, %v1145
    %v1297 = vsub.f32 %v913, %v1145
    %v1298 = vsub.f32 %v914, %v1150
    %v1299 = vsub.f32 %v915, %v1150
    %v1300 = vsub.f32 %v916, %v1155
    %v1301 = vsub.f32 %v917, %v1155
    %v1302 = vsub.f32 %v918, %v1160
    %v1303 = vsub.f32 %v919, %v1160
    %v1304 = vsub.f32 %v920, %v1165
    %v1305 = vsub.f32 %v921, %v1165
    %v1306 = vsub.f32 %v922, %v1170
    %v1307 = vsub.f32 %v923, %v1170
    %v1308 = vsub.f32 %v924, %v1175
    %v1309 = vsub.f32 %v925, %v1175
    %v1310 = vsub.f32 %v926, %v1180
    %v1311 = vsub.f32 %v927, %v1180
    %v1312 = vsub.f32 %v928, %v1185
    %v1313 = vsub.f32 %v929, %v1185
    %v1314 = vsub.f32 %v930, %v1190
    %v1315 = vsub.f32 %v931, %v1190
    %v1316 = vsub.f32 %v932, %v1195
    %v1317 = vsub.f32 %v933, %v1195
    %v1318 = vsub.f32 %v934, %v1200
    %v1319 = vsub.f32 %v935, %v1200
    %v1320 = vsub.f32 %v936, %v1205
    %v1321 = vsub.f32 %v937, %v1205
    %v1322 = vsub.f32 %v938, %v1210
    %v1323 = vsub.f32 %v939, %v1210
    %v1324 = vsub.f32 %v940, %v1215
    %v1325 = vsub.f32 %v941, %v1215
    %v1326 = vsub.f32 %v942, %v1220
    %v1327 = vsub.f32 %v943, %v1220
    %v1328 = vsub.f32 %v944, %v1225
    %v1329 = vsub.f32 %v945, %v1225
    %v1330 = vsub.f32 %v946, %v1230
    %v1331 = vsub.f32 %v947, %v1230
    %v1332 = vsub.f32 %v948, %v1235
    %v1333 = vsub.f32 %v949, %v1235
    %v1334 = vsub.f32 %v950, %v1240
    %v1335 = vsub.f32 %v951, %v1240
    %v1336 = vsub.f32 %v952, %v1245
    %v1337 = vsub.f32 %v953, %v1245
    %v1338 = vsub.f32 %v954, %v1250
    %v1339 = vsub.f32 %v955, %v1250
    %v1340 = vsub.f32 %v956, %v1255
    %v1341 = vsub.f32 %v957, %v1255
    %v1342 = vsub.f32 %v958, %v1260
    %v1343 = vsub.f32 %v959, %v1260
    %v1344 = vsub.f32 %v960, %v1265
    %v1345 = vsub.f32 %v961, %v1265
    %v1346 = vsub.f32 %v962, %v1270
    %v1347 = vsub.f32 %v963, %v1270
    %v1348 = vsub.f32 %v964, %v1275
    %v1349 = vsub.f32 %v965, %v1275
    %v1350 = vsub.f32 %v966, %v1280
    %v1351 = vsub.f32 %v967, %v1280
    %v1352 = vsub.f32 %v968, %v1285
    %v1353 = vsub.f32 %v969, %v1285
    %v1354 = vsub.f32 %v970, %v1290
    %v1355 = vsub.f32 %v971, %v1290
    %v1356 = vmul.f32 %v1292, 1.442695
    %v1357 = vpow.pop %v1356
    %v1358 = vmul.f32 %v1293, 1.442695
    %v1359 = vpow.pop %v1358
    %v1360 = vmul.f32 %v1294, 1.442695
    %v1361 = vpow.pop %v1360
    %v1362 = vmul.f32 %v1295, 1.442695
    %v1363 = vpow.pop %v1362
    %v1364 = vmul.f32 %v1296, 1.442695
    %v1365 = vpow.pop %v1364
    %v1366 = vmul.f32 %v1297, 1.442695
    %v1367 = vpow.pop %v1366
    %v1368 = vmul.f32 %v1298, 1.442695
    %v1369 = vpow.pop %v1368
    %v1370 = vmul.f32 %v1299, 1.442695
    %v1371 = vpow.pop %v1370
    %v1372 = vmul.f32 %v1300, 1.442695
    %v1373 = vpow.pop %v1372
    %v1374 = vmul.f32 %v1301, 1.442695
    %v1375 = vpow.pop %v1374
    %v1376 = vmul.f32 %v1302, 1.442695
    %v1377 = vpow.pop %v1376
    %v1378 = vmul.f32 %v1303, 1.442695
    %v1379 = vpow.pop %v1378
    %v1380 = vmul.f32 %v1304, 1.442695
    %v1381 = vpow.pop %v1380
    %v1382 = vmul.f32 %v1305, 1.442695
    %v1383 = vpow.pop %v1382
    %v1384 = vmul.f32 %v1306, 1.442695
    %v1385 = vpow.pop %v1384
    %v1386 = vmul.f32 %v1307, 1.442695
    %v1387 = vpow.pop %v1386
    %v1388 = vmul.f32 %v1308, 1.442695
    %v1389 = vpow.pop %v1388
    %v1390 = vmul.f32 %v1309, 1.442695
    %v1391 = vpow.pop %v1390
    %v1392 = vmul.f32 %v1310, 1.442695
    %v1393 = vpow.pop %v1392
    %v1394 = vmul.f32 %v1311, 1.442695
    %v1395 = vpow.pop %v1394
    %v1396 = vmul.f32 %v1312, 1.442695
    %v1397 = vpow.pop %v1396
    %v1398 = vmul.f32 %v1313, 1.442695
    %v1399 = vpow.pop %v1398
    %v1400 = vmul.f32 %v1314, 1.442695
    %v1401 = vpow.pop %v1400
    %v1402 = vmul.f32 %v1315, 1.442695
    %v1403 = vpow.pop %v1402
    %v1404 = vmul.f32 %v1316, 1.442695
    %v1405 = vpow.pop %v1404
    %v1406 = vmul.f32 %v1317, 1.442695
    %v1407 = vpow.pop %v1406
    %v1408 = vmul.f32 %v1318, 1.442695
    %v1409 = vpow.pop %v1408
    %v1410 = vmul.f32 %v1319, 1.442695
    %v1411 = vpow.pop %v1410
    %v1412 = vmul.f32 %v1320, 1.442695
    %v1413 = vpow.pop %v1412
    %v1414 = vmul.f32 %v1321, 1.442695
    %v1415 = vpow.pop %v1414
    %v1416 = vmul.f32 %v1322, 1.442695
    %v1417 = vpow.pop %v1416
    %v1418 = vmul.f32 %v1323, 1.442695
    %v1419 = vpow.pop %v1418
    %v1420 = vmul.f32 %v1324, 1.442695
    %v1421 = vpow.pop %v1420
    %v1422 = vmul.f32 %v1325, 1.442695
    %v1423 = vpow.pop %v1422
    %v1424 = vmul.f32 %v1326, 1.442695
    %v1425 = vpow.pop %v1424
    %v1426 = vmul.f32 %v1327, 1.442695
    %v1427 = vpow.pop %v1426
    %v1428 = vmul.f32 %v1328, 1.442695
    %v1429 = vpow.pop %v1428
    %v1430 = vmul.f32 %v1329, 1.442695
    %v1431 = vpow.pop %v1430
    %v1432 = vmul.f32 %v1330, 1.442695
    %v1433 = vpow.pop %v1432
    %v1434 = vmul.f32 %v1331, 1.442695
    %v1435 = vpow.pop %v1434
    %v1436 = vmul.f32 %v1332, 1.442695
    %v1437 = vpow.pop %v1436
    %v1438 = vmul.f32 %v1333, 1.442695
    %v1439 = vpow.pop %v1438
    %v1440 = vmul.f32 %v1334, 1.442695
    %v1441 = vpow.pop %v1440
    %v1442 = vmul.f32 %v1335, 1.442695
    %v1443 = vpow.pop %v1442
    %v1444 = vmul.f32 %v1336, 1.442695
    %v1445 = vpow.pop %v1444
    %v1446 = vmul.f32 %v1337, 1.442695
    %v1447 = vpow.pop %v1446
    %v1448 = vmul.f32 %v1338, 1.442695
    %v1449 = vpow.pop %v1448
    %v1450 = vmul.f32 %v1339, 1.442695
    %v1451 = vpow.pop %v1450
    %v1452 = vmul.f32 %v1340, 1.442695
    %v1453 = vpow.pop %v1452
    %v1454 = vmul.f32 %v1341, 1.442695
    %v1455 = vpow.pop %v1454
    %v1456 = vmul.f32 %v1342, 1.442695
    %v1457 = vpow.pop %v1456
    %v1458 = vmul.f32 %v1343, 1.442695
    %v1459 = vpow.pop %v1458
    %v1460 = vmul.f32 %v1344, 1.442695
    %v1461 = vpow.pop %v1460
    %v1462 = vmul.f32 %v1345, 1.442695
    %v1463 = vpow.pop %v1462
    %v1464 = vmul.f32 %v1346, 1.442695
    %v1465 = vpow.pop %v1464
    %v1466 = vmul.f32 %v1347, 1.442695
    %v1467 = vpow.pop %v1466
    %v1468 = vmul.f32 %v1348, 1.442695
    %v1469 = vpow.pop %v1468
    %v1470 = vmul.f32 %v1349, 1.442695
    %v1471 = vpow.pop %v1470
    %v1472 = vmul.f32 %v1350, 1.442695
    %v1473 = vpow.pop %v1472
    %v1474 = vmul.f32 %v1351, 1.442695
    %v1475 = vpow.pop %v1474
    %v1476 = vmul.f32 %v1352, 1.442695
    %v1477 = vpow.pop %v1476
    %v1478 = vmul.f32 %v1353, 1.442695
    %v1479 = vpow.pop %v1478
    %v1480 = vmul.f32 %v1354, 1.442695
    %v1481 = vpow.pop %v1480
    %v1482 = vmul.f32 %v1355, 1.442695
    %v1483 = vpow.pop %v1482
    %v1484 = vsub.f32 %v972, %v1100
    %v1485 = vsub.f32 %v973, %v1101
    %v1486 = vsub.f32 %v974, %v1102
    %v1487 = vsub.f32 %v975, %v1103
    %v1488 = vsub.f32 %v976, %v1104
    %v1489 = vsub.f32 %v977, %v1105
    %v1490 = vsub.f32 %v978, %v1106
    %v1491 = vsub.f32 %v979, %v1107
    %v1492 = vsub.f32 %v980, %v1108
    %v1493 = vsub.f32 %v981, %v1109
    %v1494 = vsub.f32 %v982, %v1110
    %v1495 = vsub.f32 %v983, %v1111
    %v1496 = vsub.f32 %v984, %v1112
    %v1497 = vsub.f32 %v985, %v1113
    %v1498 = vsub.f32 %v986, %v1114
    %v1499 = vsub.f32 %v987, %v1115
    %v1500 = vsub.f32 %v988, %v1116
    %v1501 = vsub.f32 %v989, %v1117
    %v1502 = vsub.f32 %v990, %v1118
    %v1503 = vsub.f32 %v991, %v1119
    %v1504 = vsub.f32 %v992, %v1120
    %v1505 = vsub.f32 %v993, %v1121
    %v1506 = vsub.f32 %v994, %v1122
    %v1507 = vsub.f32 %v995, %v1123
    %v1508 = vsub.f32 %v996, %v1124
    %v1509 = vsub.f32 %v997, %v1125
    %v1510 = vsub.f32 %v998, %v1126
    %v1511 = vsub.f32 %v999, %v1127
    %v1512 = vsub.f32 %v1000, %v1128
    %v1513 = vsub.f32 %v1001, %v1129
    %v1514 = vsub.f32 %v1002, %v1130
    %v1515 = vsub.f32 %v1003, %v1131
    %v1516 = vmul.f32 %v1484, 1.442695
    %v1517 = vpow.pop %v1516
    %v1518 = vmul.f32 %v1485, 1.442695
    %v1519 = vpow.pop %v1518
    %v1520 = vmul.f32 %v1486, 1.442695
    %v1521 = vpow.pop %v1520
    %v1522 = vmul.f32 %v1487, 1.442695
    %v1523 = vpow.pop %v1522
    %v1524 = vmul.f32 %v1488, 1.442695
    %v1525 = vpow.pop %v1524
    %v1526 = vmul.f32 %v1489, 1.442695
    %v1527 = vpow.pop %v1526
    %v1528 = vmul.f32 %v1490, 1.442695
    %v1529 = vpow.pop %v1528
    %v1530 = vmul.f32 %v1491, 1.442695
    %v1531 = vpow.pop %v1530
    %v1532 = vmul.f32 %v1492, 1.442695
    %v1533 = vpow.pop %v1532
    %v1534 = vmul.f32 %v1493, 1.442695
    %v1535 = vpow.pop %v1534
    %v1536 = vmul.f32 %v1494, 1.442695
    %v1537 = vpow.pop %v1536
    %v1538 = vmul.f32 %v1495, 1.442695
    %v1539 = vpow.pop %v1538
    %v1540 = vmul.f32 %v1496, 1.442695
    %v1541 = vpow.pop %v1540
    %v1542 = vmul.f32 %v1497, 1.442695
    %v1543 = vpow.pop %v1542
    %v1544 = vmul.f32 %v1498, 1.442695
    %v1545 = vpow.pop %v1544
    %v1546 = vmul.f32 %v1499, 1.442695
    %v1547 = vpow.pop %v1546
    %v1548 = vmul.f32 %v1500, 1.442695
    %v1549 = vpow.pop %v1548
    %v1550 = vmul.f32 %v1501, 1.442695
    %v1551 = vpow.pop %v1550
    %v1552 = vmul.f32 %v1502, 1.442695
    %v1553 = vpow.pop %v1552
    %v1554 = vmul.f32 %v1503, 1.442695
    %v1555 = vpow.pop %v1554
    %v1556 = vmul.f32 %v1504, 1.442695
    %v1557 = vpow.pop %v1556
    %v1558 = vmul.f32 %v1505, 1.442695
    %v1559 = vpow.pop %v1558
    %v1560 = vmul.f32 %v1506, 1.442695
    %v1561 = vpow.pop %v1560
    %v1562 = vmul.f32 %v1507, 1.442695
    %v1563 = vpow.pop %v1562
    %v1564 = vmul.f32 %v1508, 1.442695
    %v1565 = vpow.pop %v1564
    %v1566 = vmul.f32 %v1509, 1.442695
    %v1567 = vpow.pop %v1566
    %v1568 = vmul.f32 %v1510, 1.442695
    %v1569 = vpow.pop %v1568
    %v1570 = vmul.f32 %v1511, 1.442695
    %v1571 = vpow.pop %v1570
    %v1572 = vmul.f32 %v1512, 1.442695
    %v1573 = vpow.pop %v1572
    %v1574 = vmul.f32 %v1513, 1.442695
    %v1575 = vpow.pop %v1574
    %v1576 = vmul.f32 %v1514, 1.442695
    %v1577 = vpow.pop %v1576
    %v1578 = vmul.f32 %v1515, 1.442695
    %v1579 = vpow.pop %v1578
    %v1580 = vld [vmem:[#allocation3] sm:$0xff]
    %v1581 = vld [vmem:[#allocation3 + $0x8] sm:$0xff]
    %v1582 = vld [vmem:[#allocation3 + $0x10] sm:$0xff]
    %v1583 = vld [vmem:[#allocation3 + $0x18] sm:$0xff]
    %v1584 = vld [vmem:[#allocation3 + $0x20] sm:$0xff]
    %v1585 = vld [vmem:[#allocation3 + $0x28] sm:$0xff]
    %v1586 = vld [vmem:[#allocation3 + $0x30] sm:$0xff]
    %v1587 = vld [vmem:[#allocation3 + $0x38] sm:$0xff]
    %v1588 = vld [vmem:[#allocation3 + $0x40] sm:$0xff]
    %v1589 = vld [vmem:[#allocation3 + $0x48] sm:$0xff]
    %v1590 = vld [vmem:[#allocation3 + $0x50] sm:$0xff]
    %v1591 = vld [vmem:[#allocation3 + $0x58] sm:$0xff]
    %v1592 = vld [vmem:[#allocation3 + $0x60] sm:$0xff]
    %v1593 = vld [vmem:[#allocation3 + $0x68] sm:$0xff]
    %v1594 = vld [vmem:[#allocation3 + $0x70] sm:$0xff]
    %v1595 = vld [vmem:[#allocation3 + $0x78] sm:$0xff]
    %v1596 = vld [vmem:[#allocation3 + $0x80] sm:$0xff]
    %v1597 = vld [vmem:[#allocation3 + $0x88] sm:$0xff]
    %v1598 = vld [vmem:[#allocation3 + $0x90] sm:$0xff]
    %v1599 = vld [vmem:[#allocation3 + $0x98] sm:$0xff]
    %v1600 = vld [vmem:[#allocation3 + $0xa0] sm:$0xff]
    %v1601 = vld [vmem:[#allocation3 + $0xa8] sm:$0xff]
    %v1602 = vld [vmem:[#allocation3 + $0xb0] sm:$0xff]
    %v1603 = vld [vmem:[#allocation3 + $0xb8] sm:$0xff]
    %v1604 = vld [vmem:[#allocation3 + $0xc0] sm:$0xff]
    %v1605 = vld [vmem:[#allocation3 + $0xc8] sm:$0xff]
    %v1606 = vld [vmem:[#allocation3 + $0xd0] sm:$0xff]
    %v1607 = vld [vmem:[#allocation3 + $0xd8] sm:$0xff]
    %v1608 = vld [vmem:[#allocation3 + $0xe0] sm:$0xff]
    %v1609 = vld [vmem:[#allocation3 + $0xe8] sm:$0xff]
    %v1610 = vld [vmem:[#allocation3 + $0xf0] sm:$0xff]
    %v1611 = vld [vmem:[#allocation3 + $0xf8] sm:$0xff]
    %v1612 = vmul.f32 %v1517, %v1580
    %v1613 = vmul.f32 %v1519, %v1581
    %v1614 = vmul.f32 %v1521, %v1582
    %v1615 = vmul.f32 %v1523, %v1583
    %v1616 = vmul.f32 %v1525, %v1584
    %v1617 = vmul.f32 %v1527, %v1585
    %v1618 = vmul.f32 %v1529, %v1586
    %v1619 = vmul.f32 %v1531, %v1587
    %v1620 = vmul.f32 %v1533, %v1588
    %v1621 = vmul.f32 %v1535, %v1589
    %v1622 = vmul.f32 %v1537, %v1590
    %v1623 = vmul.f32 %v1539, %v1591
    %v1624 = vmul.f32 %v1541, %v1592
    %v1625 = vmul.f32 %v1543, %v1593
    %v1626 = vmul.f32 %v1545, %v1594
    %v1627 = vmul.f32 %v1547, %v1595
    %v1628 = vmul.f32 %v1549, %v1596
    %v1629 = vmul.f32 %v1551, %v1597
    %v1630 = vmul.f32 %v1553, %v1598
    %v1631 = vmul.f32 %v1555, %v1599
    %v1632 = vmul.f32 %v1557, %v1600
    %v1633 = vmul.f32 %v1559, %v1601
    %v1634 = vmul.f32 %v1561, %v1602
    %v1635 = vmul.f32 %v1563, %v1603
    %v1636 = vmul.f32 %v1565, %v1604
    %v1637 = vmul.f32 %v1567, %v1605
    %v1638 = vmul.f32 %v1569, %v1606
    %v1639 = vmul.f32 %v1571, %v1607
    %v1640 = vmul.f32 %v1573, %v1608
    %v1641 = vmul.f32 %v1575, %v1609
    %v1642 = vmul.f32 %v1577, %v1610
    %v1643 = vmul.f32 %v1579, %v1611
    %v1644 = vadd.f32 %v1357, %v1359
    %1645 = vadd.xlane.f32.xlu0 %v1644
    %v1646 = vpop.xlane.xlu0 %1645
    %v1647 = vadd.f32 %v1361, %v1363
    %1648 = vadd.xlane.f32.xlu0 %v1647
    %v1649 = vpop.xlane.xlu0 %1648
    %v1650 = vadd.f32 %v1365, %v1367
    %1651 = vadd.xlane.f32.xlu0 %v1650
    %v1652 = vpop.xlane.xlu0 %1651
    %v1653 = vadd.f32 %v1369, %v1371
    %1654 = vadd.xlane.f32.xlu0 %v1653
    %v1655 = vpop.xlane.xlu0 %1654
    %v1656 = vadd.f32 %v1373, %v1375
    %1657 = vadd.xlane.f32.xlu0 %v1656
    %v1658 = vpop.xlane.xlu0 %1657
    %v1659 = vadd.f32 %v1377, %v1379
    %1660 = vadd.xlane.f32.xlu0 %v1659
    %v1661 = vpop.xlane.xlu0 %1660
    %v1662 = vadd.f32 %v1381, %v1383
    %1663 = vadd.xlane.f32.xlu0 %v1662
    %v1664 = vpop.xlane.xlu0 %1663
    %v1665 = vadd.f32 %v1385, %v1387
    %1666 = vadd.xlane.f32.xlu0 %v1665
    %v1667 = vpop.xlane.xlu0 %1666
    %v1668 = vadd.f32 %v1389, %v1391
    %1669 = vadd.xlane.f32.xlu0 %v1668
    %v1670 = vpop.xlane.xlu0 %1669
    %v1671 = vadd.f32 %v1393, %v1395
    %1672 = vadd.xlane.f32.xlu0 %v1671
    %v1673 = vpop.xlane.xlu0 %1672
    %v1674 = vadd.f32 %v1397, %v1399
    %1675 = vadd.xlane.f32.xlu0 %v1674
    %v1676 = vpop.xlane.xlu0 %1675
    %v1677 = vadd.f32 %v1401, %v1403
    %1678 = vadd.xlane.f32.xlu0 %v1677
    %v1679 = vpop.xlane.xlu0 %1678
    %v1680 = vadd.f32 %v1405, %v1407
    %1681 = vadd.xlane.f32.xlu0 %v1680
    %v1682 = vpop.xlane.xlu0 %1681
    %v1683 = vadd.f32 %v1409, %v1411
    %1684 = vadd.xlane.f32.xlu0 %v1683
    %v1685 = vpop.xlane.xlu0 %1684
    %v1686 = vadd.f32 %v1413, %v1415
    %1687 = vadd.xlane.f32.xlu0 %v1686
    %v1688 = vpop.xlane.xlu0 %1687
    %v1689 = vadd.f32 %v1417, %v1419
    %1690 = vadd.xlane.f32.xlu0 %v1689
    %v1691 = vpop.xlane.xlu0 %1690
    %v1692 = vadd.f32 %v1421, %v1423
    %1693 = vadd.xlane.f32.xlu0 %v1692
    %v1694 = vpop.xlane.xlu0 %1693
    %v1695 = vadd.f32 %v1425, %v1427
    %1696 = vadd.xlane.f32.xlu0 %v1695
    %v1697 = vpop.xlane.xlu0 %1696
    %v1698 = vadd.f32 %v1429, %v1431
    %1699 = vadd.xlane.f32.xlu0 %v1698
    %v1700 = vpop.xlane.xlu0 %1699
    %v1701 = vadd.f32 %v1433, %v1435
    %1702 = vadd.xlane.f32.xlu0 %v1701
    %v1703 = vpop.xlane.xlu0 %1702
    %v1704 = vadd.f32 %v1437, %v1439
    %1705 = vadd.xlane.f32.xlu0 %v1704
    %v1706 = vpop.xlane.xlu0 %1705
    %v1707 = vadd.f32 %v1441, %v1443
    %1708 = vadd.xlane.f32.xlu0 %v1707
    %v1709 = vpop.xlane.xlu0 %1708
    %v1710 = vadd.f32 %v1445, %v1447
    %1711 = vadd.xlane.f32.xlu0 %v1710
    %v1712 = vpop.xlane.xlu0 %1711
    %v1713 = vadd.f32 %v1449, %v1451
    %1714 = vadd.xlane.f32.xlu0 %v1713
    %v1715 = vpop.xlane.xlu0 %1714
    %v1716 = vadd.f32 %v1453, %v1455
    %1717 = vadd.xlane.f32.xlu0 %v1716
    %v1718 = vpop.xlane.xlu0 %1717
    %v1719 = vadd.f32 %v1457, %v1459
    %1720 = vadd.xlane.f32.xlu0 %v1719
    %v1721 = vpop.xlane.xlu0 %1720
    %v1722 = vadd.f32 %v1461, %v1463
    %1723 = vadd.xlane.f32.xlu0 %v1722
    %v1724 = vpop.xlane.xlu0 %1723
    %v1725 = vadd.f32 %v1465, %v1467
    %1726 = vadd.xlane.f32.xlu0 %v1725
    %v1727 = vpop.xlane.xlu0 %1726
    %v1728 = vadd.f32 %v1469, %v1471
    %1729 = vadd.xlane.f32.xlu0 %v1728
    %v1730 = vpop.xlane.xlu0 %1729
    %v1731 = vadd.f32 %v1473, %v1475
    %1732 = vadd.xlane.f32.xlu0 %v1731
    %v1733 = vpop.xlane.xlu0 %1732
    %v1734 = vadd.f32 %v1477, %v1479
    %1735 = vadd.xlane.f32.xlu0 %v1734
    %v1736 = vpop.xlane.xlu0 %1735
    %v1737 = vadd.f32 %v1481, %v1483
    %1738 = vadd.xlane.f32.xlu0 %v1737
    %v1739 = vpop.xlane.xlu0 %1738
    %v1740 = vadd.f32 %v1612, %v1646
    %v1741 = vadd.f32 %v1613, %v1649
    %v1742 = vadd.f32 %v1614, %v1652
    %v1743 = vadd.f32 %v1615, %v1655
    %v1744 = vadd.f32 %v1616, %v1658
    %v1745 = vadd.f32 %v1617, %v1661
    %v1746 = vadd.f32 %v1618, %v1664
    %v1747 = vadd.f32 %v1619, %v1667
    %v1748 = vadd.f32 %v1620, %v1670
    %v1749 = vadd.f32 %v1621, %v1673
    %v1750 = vadd.f32 %v1622, %v1676
    %v1751 = vadd.f32 %v1623, %v1679
    %v1752 = vadd.f32 %v1624, %v1682
    %v1753 = vadd.f32 %v1625, %v1685
    %v1754 = vadd.f32 %v1626, %v1688
    %v1755 = vadd.f32 %v1627, %v1691
    %v1756 = vadd.f32 %v1628, %v1694
    %v1757 = vadd.f32 %v1629, %v1697
    %v1758 = vadd.f32 %v1630, %v1700
    %v1759 = vadd.f32 %v1631, %v1703
    %v1760 = vadd.f32 %v1632, %v1706
    %v1761 = vadd.f32 %v1633, %v1709
    %v1762 = vadd.f32 %v1634, %v1712
    %v1763 = vadd.f32 %v1635, %v1715
    %v1764 = vadd.f32 %v1636, %v1718
    %v1765 = vadd.f32 %v1637, %v1721
    %v1766 = vadd.f32 %v1638, %v1724
    %v1767 = vadd.f32 %v1639, %v1727
    %v1768 = vadd.f32 %v1640, %v1730
    %v1769 = vadd.f32 %v1641, %v1733
    %v1770 = vadd.f32 %v1642, %v1736
    %v1771 = vadd.f32 %v1643, %v1739
    %vm1772 = vcmask 7168
    %1773 = vst.msk [vmem:[#allocation3] sm:$0xff] %vm1772, %v1740
    %1774 = vst.msk [vmem:[#allocation3 + $0x8] sm:$0xff] %vm1772, %v1741
    %1775 = vst.msk [vmem:[#allocation3 + $0x10] sm:$0xff] %vm1772, %v1742
    %1776 = vst.msk [vmem:[#allocation3 + $0x18] sm:$0xff] %vm1772, %v1743
    %1777 = vst.msk [vmem:[#allocation3 + $0x20] sm:$0xff] %vm1772, %v1744
    %1778 = vst.msk [vmem:[#allocation3 + $0x28] sm:$0xff] %vm1772, %v1745
    %1779 = vst.msk [vmem:[#allocation3 + $0x30] sm:$0xff] %vm1772, %v1746
    %1780 = vst.msk [vmem:[#allocation3 + $0x38] sm:$0xff] %vm1772, %v1747
    %1781 = vst.msk [vmem:[#allocation3 + $0x40] sm:$0xff] %vm1772, %v1748
    %1782 = vst.msk [vmem:[#allocation3 + $0x48] sm:$0xff] %vm1772, %v1749
    %1783 = vst.msk [vmem:[#allocation3 + $0x50] sm:$0xff] %vm1772, %v1750
    %1784 = vst.msk [vmem:[#allocation3 + $0x58] sm:$0xff] %vm1772, %v1751
    %1785 = vst.msk [vmem:[#allocation3 + $0x60] sm:$0xff] %vm1772, %v1752
    %1786 = vst.msk [vmem:[#allocation3 + $0x68] sm:$0xff] %vm1772, %v1753
    %1787 = vst.msk [vmem:[#allocation3 + $0x70] sm:$0xff] %vm1772, %v1754
    %1788 = vst.msk [vmem:[#allocation3 + $0x78] sm:$0xff] %vm1772, %v1755
    %1789 = vst.msk [vmem:[#allocation3 + $0x80] sm:$0xff] %vm1772, %v1756
    %1790 = vst.msk [vmem:[#allocation3 + $0x88] sm:$0xff] %vm1772, %v1757
    %1791 = vst.msk [vmem:[#allocation3 + $0x90] sm:$0xff] %vm1772, %v1758
    %1792 = vst.msk [vmem:[#allocation3 + $0x98] sm:$0xff] %vm1772, %v1759
    %1793 = vst.msk [vmem:[#allocation3 + $0xa0] sm:$0xff] %vm1772, %v1760
    %1794 = vst.msk [vmem:[#allocation3 + $0xa8] sm:$0xff] %vm1772, %v1761
    %1795 = vst.msk [vmem:[#allocation3 + $0xb0] sm:$0xff] %vm1772, %v1762
    %1796 = vst.msk [vmem:[#allocation3 + $0xb8] sm:$0xff] %vm1772, %v1763
    %1797 = vst.msk [vmem:[#allocation3 + $0xc0] sm:$0xff] %vm1772, %v1764
    %1798 = vst.msk [vmem:[#allocation3 + $0xc8] sm:$0xff] %vm1772, %v1765
    %1799 = vst.msk [vmem:[#allocation3 + $0xd0] sm:$0xff] %vm1772, %v1766
    %1800 = vst.msk [vmem:[#allocation3 + $0xd8] sm:$0xff] %vm1772, %v1767
    %1801 = vst.msk [vmem:[#allocation3 + $0xe0] sm:$0xff] %vm1772, %v1768
    %1802 = vst.msk [vmem:[#allocation3 + $0xe8] sm:$0xff] %vm1772, %v1769
    %1803 = vst.msk [vmem:[#allocation3 + $0xf0] sm:$0xff] %vm1772, %v1770
    %1804 = vst.msk [vmem:[#allocation3 + $0xf8] sm:$0xff] %vm1772, %v1771
    %1805 = vst.msk [vmem:[#allocation2] sm:$0xff] %vm1772, %v1100
    %1806 = vst.msk [vmem:[#allocation2 + $0x8] sm:$0xff] %vm1772, %v1101
    %1807 = vst.msk [vmem:[#allocation2 + $0x10] sm:$0xff] %vm1772, %v1102
    %1808 = vst.msk [vmem:[#allocation2 + $0x18] sm:$0xff] %vm1772, %v1103
    %1809 = vst.msk [vmem:[#allocation2 + $0x20] sm:$0xff] %vm1772, %v1104
    %1810 = vst.msk [vmem:[#allocation2 + $0x28] sm:$0xff] %vm1772, %v1105
    %1811 = vst.msk [vmem:[#allocation2 + $0x30] sm:$0xff] %vm1772, %v1106
    %1812 = vst.msk [vmem:[#allocation2 + $0x38] sm:$0xff] %vm1772, %v1107
    %1813 = vst.msk [vmem:[#allocation2 + $0x40] sm:$0xff] %vm1772, %v1108
    %1814 = vst.msk [vmem:[#allocation2 + $0x48] sm:$0xff] %vm1772, %v1109
    %1815 = vst.msk [vmem:[#allocation2 + $0x50] sm:$0xff] %vm1772, %v1110
    %1816 = vst.msk [vmem:[#allocation2 + $0x58] sm:$0xff] %vm1772, %v1111
    %1817 = vst.msk [vmem:[#allocation2 + $0x60] sm:$0xff] %vm1772, %v1112
    %1818 = vst.msk [vmem:[#allocation2 + $0x68] sm:$0xff] %vm1772, %v1113
    %1819 = vst.msk [vmem:[#allocation2 + $0x70] sm:$0xff] %vm1772, %v1114
    %1820 = vst.msk [vmem:[#allocation2 + $0x78] sm:$0xff] %vm1772, %v1115
    %1821 = vst.msk [vmem:[#allocation2 + $0x80] sm:$0xff] %vm1772, %v1116
    %1822 = vst.msk [vmem:[#allocation2 + $0x88] sm:$0xff] %vm1772, %v1117
    %1823 = vst.msk [vmem:[#allocation2 + $0x90] sm:$0xff] %vm1772, %v1118
    %1824 = vst.msk [vmem:[#allocation2 + $0x98] sm:$0xff] %vm1772, %v1119
    %1825 = vst.msk [vmem:[#allocation2 + $0xa0] sm:$0xff] %vm1772, %v1120
    %1826 = vst.msk [vmem:[#allocation2 + $0xa8] sm:$0xff] %vm1772, %v1121
    %1827 = vst.msk [vmem:[#allocation2 + $0xb0] sm:$0xff] %vm1772, %v1122
    %1828 = vst.msk [vmem:[#allocation2 + $0xb8] sm:$0xff] %vm1772, %v1123
    %1829 = vst.msk [vmem:[#allocation2 + $0xc0] sm:$0xff] %vm1772, %v1124
    %1830 = vst.msk [vmem:[#allocation2 + $0xc8] sm:$0xff] %vm1772, %v1125
    %1831 = vst.msk [vmem:[#allocation2 + $0xd0] sm:$0xff] %vm1772, %v1126
    %1832 = vst.msk [vmem:[#allocation2 + $0xd8] sm:$0xff] %vm1772, %v1127
    %1833 = vst.msk [vmem:[#allocation2 + $0xe0] sm:$0xff] %vm1772, %v1128
    %1834 = vst.msk [vmem:[#allocation2 + $0xe8] sm:$0xff] %vm1772, %v1129
    %1835 = vst.msk [vmem:[#allocation2 + $0xf0] sm:$0xff] %vm1772, %v1130
    %1836 = vst.msk [vmem:[#allocation2 + $0xf8] sm:$0xff] %vm1772, %v1131
    %v1837 = vmax.f32 %v908, %v912
    %v1838 = vmax.f32 %v910, %v914
    %v1839 = vmax.f32 %v1837, %v916
    %v1840 = vmax.f32 %v1838, %v918
    %v1841 = vmax.f32 %v1839, %v920
    %v1842 = vmax.f32 %v1840, %v922
    %v1843 = vmax.f32 %v1841, %v924
    %v1844 = vmax.f32 %v1842, %v926
    %v1845 = vmax.f32 %v1843, %v928
    %v1846 = vmax.f32 %v1844, %v930
    %v1847 = vmax.f32 %v1845, %v932
    %v1848 = vmax.f32 %v1846, %v934
    %v1849 = vmax.f32 %v1847, %v936
    %v1850 = vmax.f32 %v1848, %v938
    %v1851 = vmax.f32 %v1849, %v940
    %v1852 = vmax.f32 %v1850, %v942
    %v1853 = vmax.f32 %v1851, %v944
    %v1854 = vmax.f32 %v1852, %v946
    %v1855 = vmax.f32 %v1853, %v948
    %v1856 = vmax.f32 %v1854, %v950
    %v1857 = vmax.f32 %v1855, %v952
    %v1858 = vmax.f32 %v1856, %v954
    %v1859 = vmax.f32 %v1857, %v956
    %v1860 = vmax.f32 %v1858, %v958
    %v1861 = vmax.f32 %v1859, %v960
    %v1862 = vmax.f32 %v1860, %v962
    %v1863 = vmax.f32 %v1861, %v964
    %v1864 = vmax.f32 %v1862, %v966
    %v1865 = vmax.f32 %v1863, %v968
    %v1866 = vmax.f32 %v1864, %v970
    %v1867 = vmax.f32 %v1865, %v1866
    %v1868 = vrot.slane %v1867, 4
    %v1869 = vmax.f32 %v1867, %v1868
    %v1870 = vrot.slane %v1869, 2
    %v1871 = vmax.f32 %v1869, %v1870
    %v1872 = vrot.slane %v1871, 1
    %v1873 = vmax.f32 %v1871, %v1872
    %v1874 = vmax.f32 %v909, %v913
    %v1875 = vmax.f32 %v911, %v915
    %v1876 = vmax.f32 %v1874, %v917
    %v1877 = vmax.f32 %v1875, %v919
    %v1878 = vmax.f32 %v1876, %v921
    %v1879 = vmax.f32 %v1877, %v923
    %v1880 = vmax.f32 %v1878, %v925
    %v1881 = vmax.f32 %v1879, %v927
    %v1882 = vmax.f32 %v1880, %v929
    %v1883 = vmax.f32 %v1881, %v931
    %v1884 = vmax.f32 %v1882, %v933
    %v1885 = vmax.f32 %v1883, %v935
    %v1886 = vmax.f32 %v1884, %v937
    %v1887 = vmax.f32 %v1885, %v939
    %v1888 = vmax.f32 %v1886, %v941
    %v1889 = vmax.f32 %v1887, %v943
    %v1890 = vmax.f32 %v1888, %v945
    %v1891 = vmax.f32 %v1889, %v947
    %v1892 = vmax.f32 %v1890, %v949
    %v1893 = vmax.f32 %v1891, %v951
    %v1894 = vmax.f32 %v1892, %v953
    %v1895 = vmax.f32 %v1893, %v955
    %v1896 = vmax.f32 %v1894, %v957
    %v1897 = vmax.f32 %v1895, %v959
    %v1898 = vmax.f32 %v1896, %v961
    %v1899 = vmax.f32 %v1897, %v963
    %v1900 = vmax.f32 %v1898, %v965
    %v1901 = vmax.f32 %v1899, %v967
    %v1902 = vmax.f32 %v1900, %v969
    %v1903 = vmax.f32 %v1901, %v971
    %v1904 = vmax.f32 %v1902, %v1903
    %v1905 = vrot.slane %v1904, 4
    %v1906 = vmax.f32 %v1904, %v1905
    %v1907 = vrot.slane %v1906, 2
    %v1908 = vmax.f32 %v1906, %v1907
    %v1909 = vrot.slane %v1908, 1
    %v1910 = vmax.f32 %v1908, %v1909
    %v1911 = vsub.f32 %v908, %v1873
    %v1912 = vsub.f32 %v909, %v1910
    %v1913 = vsub.f32 %v910, %v1873
    %v1914 = vsub.f32 %v911, %v1910
    %v1915 = vsub.f32 %v912, %v1873
    %v1916 = vsub.f32 %v913, %v1910
    %v1917 = vsub.f32 %v914, %v1873
    %v1918 = vsub.f32 %v915, %v1910
    %v1919 = vsub.f32 %v916, %v1873
    %v1920 = vsub.f32 %v917, %v1910
    %v1921 = vsub.f32 %v918, %v1873
    %v1922 = vsub.f32 %v919, %v1910
    %v1923 = vsub.f32 %v920, %v1873
    %v1924 = vsub.f32 %v921, %v1910
    %v1925 = vsub.f32 %v922, %v1873
    %v1926 = vsub.f32 %v923, %v1910
    %v1927 = vsub.f32 %v924, %v1873
    %v1928 = vsub.f32 %v925, %v1910
    %v1929 = vsub.f32 %v926, %v1873
    %v1930 = vsub.f32 %v927, %v1910
    %v1931 = vsub.f32 %v928, %v1873
    %v1932 = vsub.f32 %v929, %v1910
    %v1933 = vsub.f32 %v930, %v1873
    %v1934 = vsub.f32 %v931, %v1910
    %v1935 = vsub.f32 %v932, %v1873
    %v1936 = vsub.f32 %v933, %v1910
    %v1937 = vsub.f32 %v934, %v1873
    %v1938 = vsub.f32 %v935, %v1910
    %v1939 = vsub.f32 %v936, %v1873
    %v1940 = vsub.f32 %v937, %v1910
    %v1941 = vsub.f32 %v938, %v1873
    %v1942 = vsub.f32 %v939, %v1910
    %v1943 = vsub.f32 %v940, %v1873
    %v1944 = vsub.f32 %v941, %v1910
    %v1945 = vsub.f32 %v942, %v1873
    %v1946 = vsub.f32 %v943, %v1910
    %v1947 = vsub.f32 %v944, %v1873
    %v1948 = vsub.f32 %v945, %v1910
    %v1949 = vsub.f32 %v946, %v1873
    %v1950 = vsub.f32 %v947, %v1910
    %v1951 = vsub.f32 %v948, %v1873
    %v1952 = vsub.f32 %v949, %v1910
    %v1953 = vsub.f32 %v950, %v1873
    %v1954 = vsub.f32 %v951, %v1910
    %v1955 = vsub.f32 %v952, %v1873
    %v1956 = vsub.f32 %v953, %v1910
    %v1957 = vsub.f32 %v954, %v1873
    %v1958 = vsub.f32 %v955, %v1910
    %v1959 = vsub.f32 %v956, %v1873
    %v1960 = vsub.f32 %v957, %v1910
    %v1961 = vsub.f32 %v958, %v1873
    %v1962 = vsub.f32 %v959, %v1910
    %v1963 = vsub.f32 %v960, %v1873
    %v1964 = vsub.f32 %v961, %v1910
    %v1965 = vsub.f32 %v962, %v1873
    %v1966 = vsub.f32 %v963, %v1910
    %v1967 = vsub.f32 %v964, %v1873
    %v1968 = vsub.f32 %v965, %v1910
    %v1969 = vsub.f32 %v966, %v1873
    %v1970 = vsub.f32 %v967, %v1910
    %v1971 = vsub.f32 %v968, %v1873
    %v1972 = vsub.f32 %v969, %v1910
    %v1973 = vsub.f32 %v970, %v1873
    %v1974 = vsub.f32 %v971, %v1910
    %v1975 = vmul.f32 %v1911, 1.442695
    %v1976 = vpow.pop %v1975
    %v1977 = vmul.f32 %v1912, 1.442695
    %v1978 = vpow.pop %v1977
    %v1979 = vmul.f32 %v1913, 1.442695
    %v1980 = vpow.pop %v1979
    %v1981 = vmul.f32 %v1914, 1.442695
    %v1982 = vpow.pop %v1981
    %v1983 = vmul.f32 %v1915, 1.442695
    %v1984 = vpow.pop %v1983
    %v1985 = vmul.f32 %v1916, 1.442695
    %v1986 = vpow.pop %v1985
    %v1987 = vmul.f32 %v1917, 1.442695
    %v1988 = vpow.pop %v1987
    %v1989 = vmul.f32 %v1918, 1.442695
    %v1990 = vpow.pop %v1989
    %v1991 = vmul.f32 %v1919, 1.442695
    %v1992 = vpow.pop %v1991
    %v1993 = vmul.f32 %v1920, 1.442695
    %v1994 = vpow.pop %v1993
    %v1995 = vmul.f32 %v1921, 1.442695
    %v1996 = vpow.pop %v1995
    %v1997 = vmul.f32 %v1922, 1.442695
    %v1998 = vpow.pop %v1997
    %v1999 = vmul.f32 %v1923, 1.442695
    %v2000 = vpow.pop %v1999
    %v2001 = vmul.f32 %v1924, 1.442695
    %v2002 = vpow.pop %v2001
    %v2003 = vmul.f32 %v1925, 1.442695
    %v2004 = vpow.pop %v2003
    %v2005 = vmul.f32 %v1926, 1.442695
    %v2006 = vpow.pop %v2005
    %v2007 = vmul.f32 %v1927, 1.442695
    %v2008 = vpow.pop %v2007
    %v2009 = vmul.f32 %v1928, 1.442695
    %v2010 = vpow.pop %v2009
    %v2011 = vmul.f32 %v1929, 1.442695
    %v2012 = vpow.pop %v2011
    %v2013 = vmul.f32 %v1930, 1.442695
    %v2014 = vpow.pop %v2013
    %v2015 = vmul.f32 %v1931, 1.442695
    %v2016 = vpow.pop %v2015
    %v2017 = vmul.f32 %v1932, 1.442695
    %v2018 = vpow.pop %v2017
    %v2019 = vmul.f32 %v1933, 1.442695
    %v2020 = vpow.pop %v2019
    %v2021 = vmul.f32 %v1934, 1.442695
    %v2022 = vpow.pop %v2021
    %v2023 = vmul.f32 %v1935, 1.442695
    %v2024 = vpow.pop %v2023
    %v2025 = vmul.f32 %v1936, 1.442695
    %v2026 = vpow.pop %v2025
    %v2027 = vmul.f32 %v1937, 1.442695
    %v2028 = vpow.pop %v2027
    %v2029 = vmul.f32 %v1938, 1.442695
    %v2030 = vpow.pop %v2029
    %v2031 = vmul.f32 %v1939, 1.442695
    %v2032 = vpow.pop %v2031
    %v2033 = vmul.f32 %v1940, 1.442695
    %v2034 = vpow.pop %v2033
    %v2035 = vmul.f32 %v1941, 1.442695
    %v2036 = vpow.pop %v2035
    %v2037 = vmul.f32 %v1942, 1.442695
    %v2038 = vpow.pop %v2037
    %v2039 = vmul.f32 %v1943, 1.442695
    %v2040 = vpow.pop %v2039
    %v2041 = vmul.f32 %v1944, 1.442695
    %v2042 = vpow.pop %v2041
    %v2043 = vmul.f32 %v1945, 1.442695
    %v2044 = vpow.pop %v2043
    %v2045 = vmul.f32 %v1946, 1.442695
    %v2046 = vpow.pop %v2045
    %v2047 = vmul.f32 %v1947, 1.442695
    %v2048 = vpow.pop %v2047
    %v2049 = vmul.f32 %v1948, 1.442695
    %v2050 = vpow.pop %v2049
    %v2051 = vmul.f32 %v1949, 1.442695
    %v2052 = vpow.pop %v2051
    %v2053 = vmul.f32 %v1950, 1.442695
    %v2054 = vpow.pop %v2053
    %v2055 = vmul.f32 %v1951, 1.442695
    %v2056 = vpow.pop %v2055
    %v2057 = vmul.f32 %v1952, 1.442695
    %v2058 = vpow.pop %v2057
    %v2059 = vmul.f32 %v1953, 1.442695
    %v2060 = vpow.pop %v2059
    %v2061 = vmul.f32 %v1954, 1.442695
    %v2062 = vpow.pop %v2061
    %v2063 = vmul.f32 %v1955, 1.442695
    %v2064 = vpow.pop %v2063
    %v2065 = vmul.f32 %v1956, 1.442695
    %v2066 = vpow.pop %v2065
    %v2067 = vmul.f32 %v1957, 1.442695
    %v2068 = vpow.pop %v2067
    %v2069 = vmul.f32 %v1958, 1.442695
    %v2070 = vpow.pop %v2069
    %v2071 = vmul.f32 %v1959, 1.442695
    %v2072 = vpow.pop %v2071
    %v2073 = vmul.f32 %v1960, 1.442695
    %v2074 = vpow.pop %v2073
    %v2075 = vmul.f32 %v1961, 1.442695
    %v2076 = vpow.pop %v2075
    %v2077 = vmul.f32 %v1962, 1.442695
    %v2078 = vpow.pop %v2077
    %v2079 = vmul.f32 %v1963, 1.442695
    %v2080 = vpow.pop %v2079
    %v2081 = vmul.f32 %v1964, 1.442695
    %v2082 = vpow.pop %v2081
    %v2083 = vmul.f32 %v1965, 1.442695
    %v2084 = vpow.pop %v2083
    %v2085 = vmul.f32 %v1966, 1.442695
    %v2086 = vpow.pop %v2085
    %v2087 = vmul.f32 %v1967, 1.442695
    %v2088 = vpow.pop %v2087
    %v2089 = vmul.f32 %v1968, 1.442695
    %v2090 = vpow.pop %v2089
    %v2091 = vmul.f32 %v1969, 1.442695
    %v2092 = vpow.pop %v2091
    %v2093 = vmul.f32 %v1970, 1.442695
    %v2094 = vpow.pop %v2093
    %v2095 = vmul.f32 %v1971, 1.442695
    %v2096 = vpow.pop %v2095
    %v2097 = vmul.f32 %v1972, 1.442695
    %v2098 = vpow.pop %v2097
    %v2099 = vmul.f32 %v1973, 1.442695
    %v2100 = vpow.pop %v2099
    %v2101 = vmul.f32 %v1974, 1.442695
    %v2102 = vpow.pop %v2101
    %v2103 = vadd.f32 %v1976, %v1980
    %v2104 = vadd.f32 %v2103, %v1984
    %v2105 = vadd.f32 %v2104, %v1988
    %v2106 = vadd.f32 %v2105, %v1992
    %v2107 = vadd.f32 %v2106, %v1996
    %v2108 = vadd.f32 %v2107, %v2000
    %v2109 = vadd.f32 %v2108, %v2004
    %v2110 = vadd.f32 %v2109, %v2008
    %v2111 = vadd.f32 %v2110, %v2012
    %v2112 = vadd.f32 %v2111, %v2016
    %v2113 = vadd.f32 %v2112, %v2020
    %v2114 = vadd.f32 %v2113, %v2024
    %v2115 = vadd.f32 %v2114, %v2028
    %v2116 = vadd.f32 %v2115, %v2032
    %v2117 = vadd.f32 %v2116, %v2036
    %v2118 = vadd.f32 %v2117, %v2040
    %v2119 = vadd.f32 %v2118, %v2044
    %v2120 = vadd.f32 %v2119, %v2048
    %v2121 = vadd.f32 %v2120, %v2052
    %v2122 = vadd.f32 %v2121, %v2056
    %v2123 = vadd.f32 %v2122, %v2060
    %v2124 = vadd.f32 %v2123, %v2064
    %v2125 = vadd.f32 %v2124, %v2068
    %v2126 = vadd.f32 %v2125, %v2072
    %v2127 = vadd.f32 %v2126, %v2076
    %v2128 = vadd.f32 %v2127, %v2080
    %v2129 = vadd.f32 %v2128, %v2084
    %v2130 = vadd.f32 %v2129, %v2088
    %v2131 = vadd.f32 %v2130, %v2092
    %v2132 = vadd.f32 %v2131, %v2096
    %v2133 = vadd.f32 %v2132, %v2100
    %v2134 = vrot.slane %v2133, 4
    %v2135 = vadd.f32 %v2133, %v2134
    %v2136 = vrot.slane %v2135, 2
    %v2137 = vadd.f32 %v2135, %v2136
    %v2138 = vrot.slane %v2137, 1
    %v2139 = vadd.f32 %v2137, %v2138
    %v2140 = vadd.f32 %v1978, %v1982
    %v2141 = vadd.f32 %v2140, %v1986
    %v2142 = vadd.f32 %v2141, %v1990
    %v2143 = vadd.f32 %v2142, %v1994
    %v2144 = vadd.f32 %v2143, %v1998
    %v2145 = vadd.f32 %v2144, %v2002
    %v2146 = vadd.f32 %v2145, %v2006
    %v2147 = vadd.f32 %v2146, %v2010
    %v2148 = vadd.f32 %v2147, %v2014
    %v2149 = vadd.f32 %v2148, %v2018
    %v2150 = vadd.f32 %v2149, %v2022
    %v2151 = vadd.f32 %v2150, %v2026
    %v2152 = vadd.f32 %v2151, %v2030
    %v2153 = vadd.f32 %v2152, %v2034
    %v2154 = vadd.f32 %v2153, %v2038
    %v2155 = vadd.f32 %v2154, %v2042
    %v2156 = vadd.f32 %v2155, %v2046
    %v2157 = vadd.f32 %v2156, %v2050
    %v2158 = vadd.f32 %v2157, %v2054
    %v2159 = vadd.f32 %v2158, %v2058
    %v2160 = vadd.f32 %v2159, %v2062
    %v2161 = vadd.f32 %v2160, %v2066
    %v2162 = vadd.f32 %v2161, %v2070
    %v2163 = vadd.f32 %v2162, %v2074
    %v2164 = vadd.f32 %v2163, %v2078
    %v2165 = vadd.f32 %v2164, %v2082
    %v2166 = vadd.f32 %v2165, %v2086
    %v2167 = vadd.f32 %v2166, %v2090
    %v2168 = vadd.f32 %v2167, %v2094
    %v2169 = vadd.f32 %v2168, %v2098
    %v2170 = vadd.f32 %v2169, %v2102
    %v2171 = vrot.slane %v2170, 4
    %v2172 = vadd.f32 %v2170, %v2171
    %v2173 = vrot.slane %v2172, 2
    %v2174 = vadd.f32 %v2172, %v2173
    %v2175 = vrot.slane %v2174, 1
    %v2176 = vadd.f32 %v2174, %v2175
    %v2177 = vlog2.pop %v2139
    %v2178 = vmul.f32 %v2177, 0.6931472
    %v2179 = vlog2.pop %v2176
    %v2180 = vmul.f32 %v2179, 0.6931472
    %v2181 = vadd.f32 %v1873, %v2178
    %v2182 = vadd.f32 %v1910, %v2180
    %v2185 = vcombine.low %v2181, %v2182
    %v2187 = vunpack.c.l.s4 1966171168
    %v2188 = vunpack.c.0.s8 %v2187
    %v2189 = vlaneseq
    %v2190 = vshrl.u32 %v2189, 7
    %v2191 = vsub.s32 %v2188, %v2190
    %v2192 = vrot.slane %v2185, %v2191
    %v2194 = vunpack.c.l.s4 1966171168
    %v2195 = vunpack.c.0.s8 %v2194
    %v2196 = vlaneseq
    %v2197 = vshrl.u32 %v2196, 7
    %v2198 = vsub.s32 %v2195, %v2197
    %v2199 = vrot.slane %v2192, %v2198
    %v2201 = vlaneseq
    %vm2202 = vcmp.ge.s32.totalorder %v2201, 0
    %vm2203 = vcmp.lt.s32.totalorder %v2201, 256
    %vm2204 = vmand %vm2202, %vm2203
    %2205 = vst.msk [vmem:[#allocation5] sm:$0x3] %vm2204, %v2199
    // Predicated region
    $region18: #{tpu_custom_call.1} parent=1 // pred_check
      %p2206 = pneg %p19
    $region19: #{tpu_custom_call.1} parent=1 // pred_check_branch
      %2208 = sbr.rel (%p2206) target = $region21
    $region20: #{tpu_custom_call.1} parent=1 // pred_region
      %v2209 = vld [vmem:[#allocation2] sm:$0xff]
      %v2210 = vld [vmem:[#allocation2 + $0x8] sm:$0xff]
      %v2211 = vld [vmem:[#allocation2 + $0x10] sm:$0xff]
      %v2212 = vld [vmem:[#allocation2 + $0x18] sm:$0xff]
      %v2213 = vld [vmem:[#allocation2 + $0x20] sm:$0xff]
      %v2214 = vld [vmem:[#allocation2 + $0x28] sm:$0xff]
      %v2215 = vld [vmem:[#allocation2 + $0x30] sm:$0xff]
      %v2216 = vld [vmem:[#allocation2 + $0x38] sm:$0xff]
      %v2217 = vld [vmem:[#allocation2 + $0x40] sm:$0xff]
      %v2218 = vld [vmem:[#allocation2 + $0x48] sm:$0xff]
      %v2219 = vld [vmem:[#allocation2 + $0x50] sm:$0xff]
      %v2220 = vld [vmem:[#allocation2 + $0x58] sm:$0xff]
      %v2221 = vld [vmem:[#allocation2 + $0x60] sm:$0xff]
      %v2222 = vld [vmem:[#allocation2 + $0x68] sm:$0xff]
      %v2223 = vld [vmem:[#allocation2 + $0x70] sm:$0xff]
      %v2224 = vld [vmem:[#allocation2 + $0x78] sm:$0xff]
      %v2225 = vld [vmem:[#allocation2 + $0x80] sm:$0xff]
      %v2226 = vld [vmem:[#allocation2 + $0x88] sm:$0xff]
      %v2227 = vld [vmem:[#allocation2 + $0x90] sm:$0xff]
      %v2228 = vld [vmem:[#allocation2 + $0x98] sm:$0xff]
      %v2229 = vld [vmem:[#allocation2 + $0xa0] sm:$0xff]
      %v2230 = vld [vmem:[#allocation2 + $0xa8] sm:$0xff]
      %v2231 = vld [vmem:[#allocation2 + $0xb0] sm:$0xff]
      %v2232 = vld [vmem:[#allocation2 + $0xb8] sm:$0xff]
      %v2233 = vld [vmem:[#allocation2 + $0xc0] sm:$0xff]
      %v2234 = vld [vmem:[#allocation2 + $0xc8] sm:$0xff]
      %v2235 = vld [vmem:[#allocation2 + $0xd0] sm:$0xff]
      %v2236 = vld [vmem:[#allocation2 + $0xd8] sm:$0xff]
      %v2237 = vld [vmem:[#allocation2 + $0xe0] sm:$0xff]
      %v2238 = vld [vmem:[#allocation2 + $0xe8] sm:$0xff]
      %v2239 = vld [vmem:[#allocation2 + $0xf0] sm:$0xff]
      %v2240 = vld [vmem:[#allocation2 + $0xf8] sm:$0xff]
      %v2241 = vld [vmem:[#allocation3] sm:$0xff]
      %v2242 = vld [vmem:[#allocation3 + $0x8] sm:$0xff]
      %v2243 = vld [vmem:[#allocation3 + $0x10] sm:$0xff]
      %v2244 = vld [vmem:[#allocation3 + $0x18] sm:$0xff]
      %v2245 = vld [vmem:[#allocation3 + $0x20] sm:$0xff]
      %v2246 = vld [vmem:[#allocation3 + $0x28] sm:$0xff]
      %v2247 = vld [vmem:[#allocation3 + $0x30] sm:$0xff]
      %v2248 = vld [vmem:[#allocation3 + $0x38] sm:$0xff]
      %v2249 = vld [vmem:[#allocation3 + $0x40] sm:$0xff]
      %v2250 = vld [vmem:[#allocation3 + $0x48] sm:$0xff]
      %v2251 = vld [vmem:[#allocation3 + $0x50] sm:$0xff]
      %v2252 = vld [vmem:[#allocation3 + $0x58] sm:$0xff]
      %v2253 = vld [vmem:[#allocation3 + $0x60] sm:$0xff]
      %v2254 = vld [vmem:[#allocation3 + $0x68] sm:$0xff]
      %v2255 = vld [vmem:[#allocation3 + $0x70] sm:$0xff]
      %v2256 = vld [vmem:[#allocation3 + $0x78] sm:$0xff]
      %v2257 = vld [vmem:[#allocation3 + $0x80] sm:$0xff]
      %v2258 = vld [vmem:[#allocation3 + $0x88] sm:$0xff]
      %v2259 = vld [vmem:[#allocation3 + $0x90] sm:$0xff]
      %v2260 = vld [vmem:[#allocation3 + $0x98] sm:$0xff]
      %v2261 = vld [vmem:[#allocation3 + $0xa0] sm:$0xff]
      %v2262 = vld [vmem:[#allocation3 + $0xa8] sm:$0xff]
      %v2263 = vld [vmem:[#allocation3 + $0xb0] sm:$0xff]
      %v2264 = vld [vmem:[#allocation3 + $0xb8] sm:$0xff]
      %v2265 = vld [vmem:[#allocation3 + $0xc0] sm:$0xff]
      %v2266 = vld [vmem:[#allocation3 + $0xc8] sm:$0xff]
      %v2267 = vld [vmem:[#allocation3 + $0xd0] sm:$0xff]
      %v2268 = vld [vmem:[#allocation3 + $0xd8] sm:$0xff]
      %v2269 = vld [vmem:[#allocation3 + $0xe0] sm:$0xff]
      %v2270 = vld [vmem:[#allocation3 + $0xe8] sm:$0xff]
      %v2271 = vld [vmem:[#allocation3 + $0xf0] sm:$0xff]
      %v2272 = vld [vmem:[#allocation3 + $0xf8] sm:$0xff]
      %v2273 = vlog2.pop %v2241
      %v2274 = vmul.f32 %v2273, 0.6931472
      %v2275 = vlog2.pop %v2242
      %v2276 = vmul.f32 %v2275, 0.6931472
      %v2277 = vlog2.pop %v2243
      %v2278 = vmul.f32 %v2277, 0.6931472
      %v2279 = vlog2.pop %v2244
      %v2280 = vmul.f32 %v2279, 0.6931472
      %v2281 = vlog2.pop %v2245
      %v2282 = vmul.f32 %v2281, 0.6931472
      %v2283 = vlog2.pop %v2246
      %v2284 = vmul.f32 %v2283, 0.6931472
      %v2285 = vlog2.pop %v2247
      %v2286 = vmul.f32 %v2285, 0.6931472
      %v2287 = vlog2.pop %v2248
      %v2288 = vmul.f32 %v2287, 0.6931472
      %v2289 = vlog2.pop %v2249
      %v2290 = vmul.f32 %v2289, 0.6931472
      %v2291 = vlog2.pop %v2250
      %v2292 = vmul.f32 %v2291, 0.6931472
      %v2293 = vlog2.pop %v2251
      %v2294 = vmul.f32 %v2293, 0.6931472
      %v2295 = vlog2.pop %v2252
      %v2296 = vmul.f32 %v2295, 0.6931472
      %v2297 = vlog2.pop %v2253
      %v2298 = vmul.f32 %v2297, 0.6931472
      %v2299 = vlog2.pop %v2254
      %v2300 = vmul.f32 %v2299, 0.6931472
      %v2301 = vlog2.pop %v2255
      %v2302 = vmul.f32 %v2301, 0.6931472
      %v2303 = vlog2.pop %v2256
      %v2304 = vmul.f32 %v2303, 0.6931472
      %v2305 = vlog2.pop %v2257
      %v2306 = vmul.f32 %v2305, 0.6931472
      %v2307 = vlog2.pop %v2258
      %v2308 = vmul.f32 %v2307, 0.6931472
      %v2309 = vlog2.pop %v2259
      %v2310 = vmul.f32 %v2309, 0.6931472
      %v2311 = vlog2.pop %v2260
      %v2312 = vmul.f32 %v2311, 0.6931472
      %v2313 = vlog2.pop %v2261
      %v2314 = vmul.f32 %v2313, 0.6931472
      %v2315 = vlog2.pop %v2262
      %v2316 = vmul.f32 %v2315, 0.6931472
      %v2317 = vlog2.pop %v2263
      %v2318 = vmul.f32 %v2317, 0.6931472
      %v2319 = vlog2.pop %v2264
      %v2320 = vmul.f32 %v2319, 0.6931472
      %v2321 = vlog2.pop %v2265
      %v2322 = vmul.f32 %v2321, 0.6931472
      %v2323 = vlog2.pop %v2266
      %v2324 = vmul.f32 %v2323, 0.6931472
      %v2325 = vlog2.pop %v2267
      %v2326 = vmul.f32 %v2325, 0.6931472
      %v2327 = vlog2.pop %v2268
      %v2328 = vmul.f32 %v2327, 0.6931472
      %v2329 = vlog2.pop %v2269
      %v2330 = vmul.f32 %v2329, 0.6931472
      %v2331 = vlog2.pop %v2270
      %v2332 = vmul.f32 %v2331, 0.6931472
      %v2333 = vlog2.pop %v2271
      %v2334 = vmul.f32 %v2333, 0.6931472
      %v2335 = vlog2.pop %v2272
      %v2336 = vmul.f32 %v2335, 0.6931472
      %v2337 = vadd.f32 %v2209, %v2274
      %v2338 = vadd.f32 %v2210, %v2276
      %v2339 = vadd.f32 %v2211, %v2278
      %v2340 = vadd.f32 %v2212, %v2280
      %v2341 = vadd.f32 %v2213, %v2282
      %v2342 = vadd.f32 %v2214, %v2284
      %v2343 = vadd.f32 %v2215, %v2286
      %v2344 = vadd.f32 %v2216, %v2288
      %v2345 = vadd.f32 %v2217, %v2290
      %v2346 = vadd.f32 %v2218, %v2292
      %v2347 = vadd.f32 %v2219, %v2294
      %v2348 = vadd.f32 %v2220, %v2296
      %v2349 = vadd.f32 %v2221, %v2298
      %v2350 = vadd.f32 %v2222, %v2300
      %v2351 = vadd.f32 %v2223, %v2302
      %v2352 = vadd.f32 %v2224, %v2304
      %v2353 = vadd.f32 %v2225, %v2306
      %v2354 = vadd.f32 %v2226, %v2308
      %v2355 = vadd.f32 %v2227, %v2310
      %v2356 = vadd.f32 %v2228, %v2312
      %v2357 = vadd.f32 %v2229, %v2314
      %v2358 = vadd.f32 %v2230, %v2316
      %v2359 = vadd.f32 %v2231, %v2318
      %v2360 = vadd.f32 %v2232, %v2320
      %v2361 = vadd.f32 %v2233, %v2322
      %v2362 = vadd.f32 %v2234, %v2324
      %v2363 = vadd.f32 %v2235, %v2326
      %v2364 = vadd.f32 %v2236, %v2328
      %v2365 = vadd.f32 %v2237, %v2330
      %v2366 = vadd.f32 %v2238, %v2332
      %v2367 = vadd.f32 %v2239, %v2334
      %v2368 = vadd.f32 %v2240, %v2336
      %2369 = vst.msk [vmem:[%s3] sm:$0xff] %vm1772, %v2337
      %2370 = vst.msk [vmem:[%s3 + $0x8] sm:$0xff] %vm1772, %v2338
      %2371 = vst.msk [vmem:[%s3 + $0x10] sm:$0xff] %vm1772, %v2339
      %2372 = vst.msk [vmem:[%s3 + $0x18] sm:$0xff] %vm1772, %v2340
      %2373 = vst.msk [vmem:[%s3 + $0x20] sm:$0xff] %vm1772, %v2341
      %2374 = vst.msk [vmem:[%s3 + $0x28] sm:$0xff] %vm1772, %v2342
      %2375 = vst.msk [vmem:[%s3 + $0x30] sm:$0xff] %vm1772, %v2343
      %2376 = vst.msk [vmem:[%s3 + $0x38] sm:$0xff] %vm1772, %v2344
      %2377 = vst.msk [vmem:[%s3 + $0x40] sm:$0xff] %vm1772, %v2345
      %2378 = vst.msk [vmem:[%s3 + $0x48] sm:$0xff] %vm1772, %v2346
      %2379 = vst.msk [vmem:[%s3 + $0x50] sm:$0xff] %vm1772, %v2347
      %2380 = vst.msk [vmem:[%s3 + $0x58] sm:$0xff] %vm1772, %v2348
      %2381 = vst.msk [vmem:[%s3 + $0x60] sm:$0xff] %vm1772, %v2349
      %2382 = vst.msk [vmem:[%s3 + $0x68] sm:$0xff] %vm1772, %v2350
      %2383 = vst.msk [vmem:[%s3 + $0x70] sm:$0xff] %vm1772, %v2351
      %2384 = vst.msk [vmem:[%s3 + $0x78] sm:$0xff] %vm1772, %v2352
      %2385 = vst.msk [vmem:[%s3 + $0x80] sm:$0xff] %vm1772, %v2353
      %2386 = vst.msk [vmem:[%s3 + $0x88] sm:$0xff] %vm1772, %v2354
      %2387 = vst.msk [vmem:[%s3 + $0x90] sm:$0xff] %vm1772, %v2355
      %2388 = vst.msk [vmem:[%s3 + $0x98] sm:$0xff] %vm1772, %v2356
      %2389 = vst.msk [vmem:[%s3 + $0xa0] sm:$0xff] %vm1772, %v2357
      %2390 = vst.msk [vmem:[%s3 + $0xa8] sm:$0xff] %vm1772, %v2358
      %2391 = vst.msk [vmem:[%s3 + $0xb0] sm:$0xff] %vm1772, %v2359
      %2392 = vst.msk [vmem:[%s3 + $0xb8] sm:$0xff] %vm1772, %v2360
      %2393 = vst.msk [vmem:[%s3 + $0xc0] sm:$0xff] %vm1772, %v2361
      %2394 = vst.msk [vmem:[%s3 + $0xc8] sm:$0xff] %vm1772, %v2362
      %2395 = vst.msk [vmem:[%s3 + $0xd0] sm:$0xff] %vm1772, %v2363
      %2396 = vst.msk [vmem:[%s3 + $0xd8] sm:$0xff] %vm1772, %v2364
      %2397 = vst.msk [vmem:[%s3 + $0xe0] sm:$0xff] %vm1772, %v2365
      %2398 = vst.msk [vmem:[%s3 + $0xe8] sm:$0xff] %vm1772, %v2366
      %2399 = vst.msk [vmem:[%s3 + $0xf0] sm:$0xff] %vm1772, %v2367
      %2400 = vst.msk [vmem:[%s3 + $0xf8] sm:$0xff] %vm1772, %v2368
    $region21: #{tpu_custom_call.1} parent=1 // pred_fallthru
      _
    // Predicated region
    $region22: #{tpu_custom_call.1} parent=1 // pred_check
      _
    $region23: #{tpu_custom_call.1} parent=1 // pred_check_branch
      %2402 = sbr.rel (0) target = $region25
    $region24: #{tpu_custom_call.1} parent=1 // pred_region
      _
    $region25: #{tpu_custom_call.1} parent=1 // pred_fallthru
      _
    // Predicated region
    $region26: #{tpu_custom_call.1} parent=1 // pred_check
      _
    $region27: #{tpu_custom_call.1} parent=1 // pred_check_branch
      %2404 = sbr.rel (0) target = $region29
    $region28: #{tpu_custom_call.1} parent=1 // pred_region
      %s2406 = ssub.s32 32, 32
      %2407 = vsyncadd [#allocation6], %s2406
      %s2409 = sshll.u32 [#allocation5], 4
      %s2410 = int_to_ptr.vmem [resolvable:$true] %s2409
      %2412 = dma.vmem_to_hbm [thread:$0]  %s2410, 32, %s4, [#allocation6]
    $region29: #{tpu_custom_call.1} parent=1 // pred_fallthru
      _
    // Predicated region
    $region30: #{tpu_custom_call.1} parent=1 // pred_check
      _
    $region31: #{tpu_custom_call.1} parent=1 // pred_check_branch
      %2414 = sbr.rel (0) target = $region33
    $region32: #{tpu_custom_call.1} parent=1 // pred_region
      _
    $region33: #{tpu_custom_call.1} parent=1 // pred_fallthru
      _
    // Predicated region
    $region34: #{tpu_custom_call.1} parent=1 // pred_check
      _
    $region35: #{tpu_custom_call.1} parent=1 // pred_check_branch
      %2416 = sbr.rel (0) target = $region37
    $region36: #{tpu_custom_call.1} parent=1 // pred_region
      %2417 = dma.done [#allocation6], 32
    $region37: #{tpu_custom_call.1} parent=1 // pred_fallthru
      _
    %2418 = vsyncpa [#allocation6], 1

</llo_original>
